<compile_context>
chip_gen: v5e
topology: v5e:2x2
jax: 0.10.0
libtpu: 0.0.40
codegen_flags: <defaults>
</compile_context>

<pallas_src>
import functools

import numpy as np
import jax
import jax.numpy as jnp
from jax import lax
from jax.experimental import pallas as pl
from jax.experimental.pallas import tpu as pltpu


# ------------------------------ fused kernel --------------------------------

def _myblock_kernel(x_ref, g_ref, bta_ref, w1_ref, b1_ref, w2_ref, b2_ref,
                    o_ref, pad1_ref, pad2_ref,
                    *, H, W, Cin, Cout, normalize, eps):
    # x_ref  : (1, Cin, H*W)   one sample, channel-major, spatial flat on lanes
    # g_ref  : (Cin, H*W)      LayerNorm gamma
    # bta_ref: (Cin, H*W)      LayerNorm beta
    # w1_ref : (9, Cout, Cin)  conv1 weights, tap k = dh*3 + dw
    # b1_ref : (Cout, 1)
    # w2_ref : (9, Cout, Cout) conv2 weights
    # b2_ref : (Cout, 1)
    # o_ref  : (1, Cout, H*W)  dense channel-major output
    # pad1_ref / pad2_ref : (Cin, S) / (Cout, S) flat zero-bordered scratch
    HW = H * W
    B = W + 1                 # interior start inside the padded flat buffer
    S = HW + 2 * W + 2        # padded flat buffer length

    # ---- LayerNorm over the whole (C, H, W) of this sample (PyTorch semantics) ----
    x = x_ref[0].astype(jnp.float32)                           # (Cin, HW)
    if normalize:
        mean = jnp.mean(x, keepdims=True)                      # (1, 1)
        var = jnp.mean(jnp.square(x - mean), keepdims=True)    # biased variance
        rstd = lax.rsqrt(var + eps)
        xn = (x - mean) * rstd * g_ref[...].astype(jnp.float32) \
             + bta_ref[...].astype(jnp.float32)
    else:
        xn = x

    # lane masks killing the row wrap-around of the left / right taps (dw = 0 / 2)
    col = lax.broadcasted_iota(jnp.int32, (1, HW), 1) % W
    mask_l = (col != 0).astype(jnp.float32)                    # zero where w == 0
    mask_r = (col != (W - 1)).astype(jnp.float32)              # zero where w == W-1

    def conv3x3_bias_silu(pad_ref, w_ref, b_ref, act, ci):
        # (re)write only the zero border; the interior is fully overwritten below
        pad_ref[:, 0:B] = jnp.zeros((ci, B), jnp.float32)
        pad_ref[:, B + HW:S] = jnp.zeros((ci, S - B - HW), jnp.float32)
        pad_ref[:, B:B + HW] = act                             # single interior store

        acc = jnp.zeros((Cout, HW), jnp.float32)
        for dh in range(3):
            for dw in range(3):
                off = dh * W + dw
                win = pad_ref[:, off:off + HW]                 # (ci, HW) shifted window
                if dw == 0:
                    win = win * mask_l
                elif dw == 2:
                    win = win * mask_r
                acc = acc + jnp.dot(w_ref[dh * 3 + dw], win,   # (Cout,ci) @ (ci,HW)
                                    preferred_element_type=jnp.float32)
        acc = acc + b_ref[...].astype(jnp.float32)             # (Cout,1) lane broadcast
        return acc * jax.nn.sigmoid(acc)                       # SiLU

    a1 = conv3x3_bias_silu(pad1_ref, w1_ref, b1_ref, xn, Cin)   # (Cout, HW)
    a2 = conv3x3_bias_silu(pad2_ref, w2_ref, b2_ref, a1, Cout)  # (Cout, HW)
    o_ref[0] = a2.astype(o_ref.dtype)


# ------------------------------ host wrappers --------------------------------

def prepare_params(params):
    """One-time, jnp-only re-layout of the PyTorch-style parameters."""
    gamma, beta, w1, b1, w2, b2 = params
    cout, cin = w1.shape[0], w1.shape[1]
    g_f = gamma.reshape(cin, -1).astype(jnp.float32)           # (Cin, H*W)  free reshape
    bt_f = beta.reshape(cin, -1).astype(jnp.float32)           # (Cin, H*W)
    # OIHW -> (KH, KW, O, I) -> (9, Cout, Cin): tap-major, weight stationary per tap
    w1_f = jnp.transpose(w1, (2, 3, 0, 1)).reshape(9, cout, cin).astype(jnp.float32)
    w2_f = jnp.transpose(w2, (2, 3, 0, 1)).reshape(9, cout, cout).astype(jnp.float32)
    b1_f = b1.reshape(cout, 1).astype(jnp.float32)
    b2_f = b2.reshape(cout, 1).astype(jnp.float32)
    return g_f, bt_f, w1_f, b1_f, w2_f, b2_f


@functools.partial(jax.jit, static_argnames=("normalize",))
def myblock_forward(x_nchw, prepped, normalize=True):
    g_f, bt_f, w1_f, b1_f, w2_f, b2_f = prepped
    N, C, H, W = x_nchw.shape
    Cout = w1_f.shape[1]
    HW = H * W
    S = HW + 2 * W + 2

    x_flat = x_nchw.reshape(N, C, HW)                          # free reshape of NCHW

    kern = functools.partial(_myblock_kernel, H=H, W=W, Cin=C, Cout=Cout,
                             normalize=normalize, eps=1e-5)
    out_flat = pl.pallas_call(
        kern,
        out_shape=jax.ShapeDtypeStruct((N, Cout, HW), x_nchw.dtype),
        grid=(N,),
        in_specs=[
            pl.BlockSpec((1, C, HW), lambda n: (n, 0, 0)),      # x (one sample)
            pl.BlockSpec((C, HW), lambda n: (0, 0)),            # LN gamma
            pl.BlockSpec((C, HW), lambda n: (0, 0)),            # LN beta
            pl.BlockSpec((9, Cout, C), lambda n: (0, 0, 0)),    # conv1 weight
            pl.BlockSpec((Cout, 1), lambda n: (0, 0)),          # conv1 bias
            pl.BlockSpec((9, Cout, Cout), lambda n: (0, 0, 0)), # conv2 weight
            pl.BlockSpec((Cout, 1), lambda n: (0, 0)),          # conv2 bias
        ],
        out_specs=pl.BlockSpec((1, Cout, HW), lambda n: (n, 0, 0)),
        scratch_shapes=[pltpu.VMEM((C, S), jnp.float32),
                        pltpu.VMEM((Cout, S), jnp.float32)],
        compiler_params=pltpu.CompilerParams(dimension_semantics=("parallel",)),
    )(x_flat, g_f, bt_f, w1_f, b1_f, w2_f, b2_f)

    return out_flat.reshape(N, Cout, H, W)                      # free reshape, no transpose


# ----------------------------- pure-JAX reference ----------------------------

def ref_forward(x, params):
    gamma, beta, w1, b1, w2, b2 = params
    mean = x.mean(axis=(1, 2, 3), keepdims=True)
    var = ((x - mean) ** 2).mean(axis=(1, 2, 3), keepdims=True)
    xn = (x - mean) / jnp.sqrt(var + 1e-5) * gamma[None] + beta[None]

    def conv(h, w, b):
        y = lax.conv_general_dilated(h, w, (1, 1), 'SAME',
                                     dimension_numbers=('NCHW', 'OIHW', 'NCHW'),
                                     precision=lax.Precision.HIGHEST)
        return y + b[None, :, None, None]

    y = conv(xn, w1, b1); y = y * jax.nn.sigmoid(y)
    y = conv(y, w2, b2);  y = y * jax.nn.sigmoid(y)
    return y


if __name__ == "__main__":
    N, C, H, W = 2, 4, 16, 16      # MyBlock(shape=(4,16,16), in_c=4, out_c=8)
    out_c = 8

    key = jax.random.PRNGKey(0)
    ks = jax.random.split(key, 7)
    x = jax.random.normal(ks[0], (N, C, H, W), jnp.float32)
    gamma = 1.0 + 0.1 * jax.random.normal(ks[1], (C, H, W), jnp.float32)
    beta = 0.1 * jax.random.normal(ks[2], (C, H, W), jnp.float32)
    w1 = 0.1 * jax.random.normal(ks[3], (out_c, C, 3, 3), jnp.float32)
    b1 = 0.1 * jax.random.normal(ks[4], (out_c,), jnp.float32)
    w2 = 0.1 * jax.random.normal(ks[5], (out_c, out_c, 3, 3), jnp.float32)
    b2 = 0.1 * jax.random.normal(ks[6], (out_c,), jnp.float32)
    params = (gamma, beta, w1, b1, w2, b2)

    prepped = prepare_params(params)                      # one-time param re-layout
    out = jax.block_until_ready(myblock_forward(x, prepped, normalize=True))
    assert out.shape == (N, out_c, H, W)

    ref = jax.block_until_ready(ref_forward(x, params))
    np.testing.assert_allclose(np.asarray(out), np.asarray(ref),
                               atol=2e-2, rtol=2e-2)
    print("KERNEL_OK")
</pallas_src>

<mosaic_0001>
module attributes {stable_mosaic.version = 11 : i64} {
  func.func @_myblock_kernel(%arg0: i32, %arg1: memref<1x4x256xf32, #tpu.memory_space<vmem>>, %arg2: memref<4x256xf32, #tpu.memory_space<vmem>>, %arg3: memref<4x256xf32, #tpu.memory_space<vmem>>, %arg4: memref<9x8x4xf32, #tpu.memory_space<vmem>>, %arg5: memref<8x1xf32, #tpu.memory_space<vmem>>, %arg6: memref<9x8x8xf32, #tpu.memory_space<vmem>>, %arg7: memref<8x1xf32, #tpu.memory_space<vmem>>, %arg8: memref<1x8x256xf32, #tpu.memory_space<vmem>>, %arg9: memref<4x290xf32, #tpu.memory_space<vmem>>, %arg10: memref<8x290xf32, #tpu.memory_space<vmem>>) attributes {dimension_semantics = [#tpu.dimension_semantics<parallel>], iteration_bounds = array<i64: 2>, scalar_prefetch = 0 : i64, scratch_operands = 2 : i64, tpu.core_type = #tpu.core_type<tc>, window_params = [{transform_indices = @transform_0, window_bounds = array<i64: 1, 4, 256>}, {pipeline_mode = #tpu.pipeline_mode<synchronous>, transform_indices = @transform_1, window_bounds = array<i64: 4, 256>}, {pipeline_mode = #tpu.pipeline_mode<synchronous>, transform_indices = @transform_2, window_bounds = array<i64: 4, 256>}, {pipeline_mode = #tpu.pipeline_mode<synchronous>, transform_indices = @transform_3, window_bounds = array<i64: 9, 8, 4>}, {pipeline_mode = #tpu.pipeline_mode<synchronous>, transform_indices = @transform_4, window_bounds = array<i64: 8, 1>}, {pipeline_mode = #tpu.pipeline_mode<synchronous>, transform_indices = @transform_5, window_bounds = array<i64: 9, 8, 8>}, {pipeline_mode = #tpu.pipeline_mode<synchronous>, transform_indices = @transform_6, window_bounds = array<i64: 8, 1>}, {transform_indices = @transform_7, window_bounds = array<i64: 1, 8, 256>}]} {
    %c0 = arith.constant 0 : index
    %c0_0 = arith.constant 0 : index
    %c0_1 = arith.constant 0 : index
    %0 = vector.load %arg1[%c0, %c0_0, %c0_1] : memref<1x4x256xf32, #tpu.memory_space<vmem>>, vector<1x4x256xf32>
    %1 = vector.shape_cast %0 : vector<1x4x256xf32> to vector<4x256xf32>
    %2 = vector.shape_cast %1 : vector<4x256xf32> to vector<1x4x256xf32>
    %cst = arith.constant dense<0.000000e+00> : vector<1xf32>
    %3 = vector.multi_reduction <add>, %2, %cst [1, 2] : vector<1x4x256xf32> to vector<1xf32>
    %4 = vector.shape_cast %3 : vector<1xf32> to vector<1x1x1xf32>
    %5 = vector.extract %4[0, 0, 0] : f32 from vector<1x1x1xf32>
    %6 = vector.broadcast %5 : f32 to vector<1x1xf32>
    %cst_2 = arith.constant 1.024000e+03 : f32
    %7 = vector.broadcast %cst_2 : f32 to vector<1x1xf32>
    %8 = arith.divf %6, %7 : vector<1x1xf32>
    %9 = vector.broadcast %8 : vector<1x1xf32> to vector<4x256xf32>
    %10 = arith.subf %1, %9 : vector<4x256xf32>
    %11 = arith.mulf %10, %10 : vector<4x256xf32>
    %12 = vector.shape_cast %11 : vector<4x256xf32> to vector<1x4x256xf32>
    %cst_3 = arith.constant dense<0.000000e+00> : vector<1xf32>
    %13 = vector.multi_reduction <add>, %12, %cst_3 [1, 2] : vector<1x4x256xf32> to vector<1xf32>
    %14 = vector.shape_cast %13 : vector<1xf32> to vector<1x1x1xf32>
    %15 = vector.extract %14[0, 0, 0] : f32 from vector<1x1x1xf32>
    %16 = vector.broadcast %15 : f32 to vector<1x1xf32>
    %cst_4 = arith.constant 1.024000e+03 : f32
    %17 = vector.broadcast %cst_4 : f32 to vector<1x1xf32>
    %18 = arith.divf %16, %17 : vector<1x1xf32>
    %cst_5 = arith.constant 9.99999974E-6 : f32
    %19 = vector.broadcast %cst_5 : f32 to vector<1x1xf32>
    %20 = arith.addf %18, %19 : vector<1x1xf32>
    %21 = math.rsqrt %20 : vector<1x1xf32>
    %22 = vector.broadcast %8 : vector<1x1xf32> to vector<4x256xf32>
    %23 = arith.subf %1, %22 : vector<4x256xf32>
    %24 = vector.broadcast %21 : vector<1x1xf32> to vector<4x256xf32>
    %25 = arith.mulf %23, %24 : vector<4x256xf32>
    %c0_6 = arith.constant 0 : index
    %c0_7 = arith.constant 0 : index
    %26 = vector.load %arg2[%c0_6, %c0_7] : memref<4x256xf32, #tpu.memory_space<vmem>>, vector<4x256xf32>
    %27 = arith.mulf %25, %26 : vector<4x256xf32>
    %c0_8 = arith.constant 0 : index
    %c0_9 = arith.constant 0 : index
    %28 = vector.load %arg3[%c0_8, %c0_9] : memref<4x256xf32, #tpu.memory_space<vmem>>, vector<4x256xf32>
    %29 = arith.addf %27, %28 : vector<4x256xf32>
    %30 = tpu.iota {dimensions = array<i32: 1>} : vector<1x256xi32>
    %c16_i32 = arith.constant 16 : i32
    %c0_i32 = arith.constant 0 : i32
    %31 = arith.cmpi eq, %c16_i32, %c0_i32 : i32
    %c1_i32 = arith.constant 1 : i32
    %32 = arith.select %31, %c1_i32, %c16_i32 : i32
    %33 = vector.broadcast %32 : i32 to vector<1x256xi32>
    %34 = arith.remsi %30, %33 : vector<1x256xi32>
    %c0_i32_10 = arith.constant 0 : i32
    %35 = vector.broadcast %c0_i32_10 : i32 to vector<1x256xi32>
    %36 = arith.cmpi ne, %34, %35 : vector<1x256xi32>
    %c0_i32_11 = arith.constant 0 : i32
    %37 = vector.broadcast %c0_i32_11 : i32 to vector<1x256xi32>
    %38 = arith.cmpi slt, %34, %37 : vector<1x256xi32>
    %c0_i32_12 = arith.constant 0 : i32
    %39 = arith.cmpi slt, %32, %c0_i32_12 : i32
    %40 = vector.broadcast %39 : i1 to vector<1x256xi1>
    %41 = vector.broadcast %40 : vector<1x256xi1> to vector<1x256xi1>
    %42 = arith.xori %38, %41 : vector<1x256xi1>
    %43 = arith.andi %42, %36 : vector<1x256xi1>
    %44 = vector.broadcast %32 : i32 to vector<1x256xi32>
    %45 = arith.addi %34, %44 : vector<1x256xi32>
    %46 = arith.select %43, %45, %34 : vector<1x256xi1>, vector<1x256xi32>
    %c0_i32_13 = arith.constant 0 : i32
    %47 = vector.broadcast %c0_i32_13 : i32 to vector<1x256xi32>
    %48 = arith.cmpi ne, %46, %47 : vector<1x256xi32>
    %49 = arith.extui %48 : vector<1x256xi1> to vector<1x256xi32>
    %50 = arith.sitofp %49 : vector<1x256xi32> to vector<1x256xf32>
    %c15_i32 = arith.constant 15 : i32
    %51 = vector.broadcast %c15_i32 : i32 to vector<1x256xi32>
    %52 = arith.cmpi ne, %46, %51 : vector<1x256xi32>
    %53 = arith.extui %52 : vector<1x256xi1> to vector<1x256xi32>
    %54 = arith.sitofp %53 : vector<1x256xi32> to vector<1x256xf32>
    %cst_14 = arith.constant 0.000000e+00 : f32
    %55 = vector.broadcast %cst_14 : f32 to vector<4x17xf32>
    %c0_15 = arith.constant 0 : index
    %c0_16 = arith.constant 0 : index
    %56 = vector.load %arg9[%c0_15, %c0_16] : memref<4x290xf32, #tpu.memory_space<vmem>>, vector<4x17xf32>
    tpu.vector_store %arg9[%c0_15, %c0_16], %55 {strides = array<i32>} : memref<4x290xf32, #tpu.memory_space<vmem>>, vector<4x17xf32>,
    %cst_17 = arith.constant 0.000000e+00 : f32
    %57 = vector.broadcast %cst_17 : f32 to vector<4x17xf32>
    %c0_18 = arith.constant 0 : index
    %c273 = arith.constant 273 : index
    %58 = vector.load %arg9[%c0_18, %c273] : memref<4x290xf32, #tpu.memory_space<vmem>>, vector<4x17xf32>
    tpu.vector_store %arg9[%c0_18, %c273], %57 {strides = array<i32>} : memref<4x290xf32, #tpu.memory_space<vmem>>, vector<4x17xf32>,
    %c0_19 = arith.constant 0 : index
    %c17 = arith.constant 17 : index
    %59 = vector.load %arg9[%c0_19, %c17] : memref<4x290xf32, #tpu.memory_space<vmem>>, vector<4x256xf32>
    tpu.vector_store %arg9[%c0_19, %c17], %29 {strides = array<i32>} : memref<4x290xf32, #tpu.memory_space<vmem>>, vector<4x256xf32>,
    %cst_20 = arith.constant 0.000000e+00 : f32
    %60 = vector.broadcast %cst_20 : f32 to vector<8x256xf32>
    %c0_21 = arith.constant 0 : index
    %c0_22 = arith.constant 0 : index
    %61 = vector.load %arg9[%c0_21, %c0_22] : memref<4x290xf32, #tpu.memory_space<vmem>>, vector<4x256xf32>
    %62 = vector.broadcast %50 : vector<1x256xf32> to vector<4x256xf32>
    %63 = arith.mulf %61, %62 : vector<4x256xf32>
    %c0_23 = arith.constant 0 : index
    %c0_24 = arith.constant 0 : index
    %c0_25 = arith.constant 0 : index
    %64 = vector.load %arg4[%c0_23, %c0_24, %c0_25] : memref<9x8x4xf32, #tpu.memory_space<vmem>>, vector<1x8x4xf32>
    %65 = vector.shape_cast %64 : vector<1x8x4xf32> to vector<8x4xf32>
    %cst_26 = arith.constant dense<0.000000e+00> : vector<8x256xf32>
    %66 = tpu.matmul %65, %63, %cst_26 {dimension_numbers = #tpu.dot_dimension_numbers<[1], [0], [0], [1], [0, 0, 1, 1], [], []>} : vector<8x4xf32>, vector<4x256xf32>, vector<8x256xf32> -> vector<8x256xf32>
    %67 = arith.addf %60, %66 : vector<8x256xf32>
    %c0_27 = arith.constant 0 : index
    %c1 = arith.constant 1 : index
    %68 = vector.load %arg9[%c0_27, %c1] : memref<4x290xf32, #tpu.memory_space<vmem>>, vector<4x256xf32>
    %c1_28 = arith.constant 1 : index
    %c0_29 = arith.constant 0 : index
    %c0_30 = arith.constant 0 : index
    %69 = vector.load %arg4[%c1_28, %c0_29, %c0_30] : memref<9x8x4xf32, #tpu.memory_space<vmem>>, vector<1x8x4xf32>
    %70 = vector.shape_cast %69 : vector<1x8x4xf32> to vector<8x4xf32>
    %cst_31 = arith.constant dense<0.000000e+00> : vector<8x256xf32>
    %71 = tpu.matmul %70, %68, %cst_31 {dimension_numbers = #tpu.dot_dimension_numbers<[1], [0], [0], [1], [0, 0, 1, 1], [], []>} : vector<8x4xf32>, vector<4x256xf32>, vector<8x256xf32> -> vector<8x256xf32>
    %72 = arith.addf %67, %71 : vector<8x256xf32>
    %c0_32 = arith.constant 0 : index
    %c2 = arith.constant 2 : index
    %73 = vector.load %arg9[%c0_32, %c2] : memref<4x290xf32, #tpu.memory_space<vmem>>, vector<4x256xf32>
    %74 = vector.broadcast %54 : vector<1x256xf32> to vector<4x256xf32>
    %75 = arith.mulf %73, %74 : vector<4x256xf32>
    %c2_33 = arith.constant 2 : index
    %c0_34 = arith.constant 0 : index
    %c0_35 = arith.constant 0 : index
    %76 = vector.load %arg4[%c2_33, %c0_34, %c0_35] : memref<9x8x4xf32, #tpu.memory_space<vmem>>, vector<1x8x4xf32>
    %77 = vector.shape_cast %76 : vector<1x8x4xf32> to vector<8x4xf32>
    %cst_36 = arith.constant dense<0.000000e+00> : vector<8x256xf32>
    %78 = tpu.matmul %77, %75, %cst_36 {dimension_numbers = #tpu.dot_dimension_numbers<[1], [0], [0], [1], [0, 0, 1, 1], [], []>} : vector<8x4xf32>, vector<4x256xf32>, vector<8x256xf32> -> vector<8x256xf32>
    %79 = arith.addf %72, %78 : vector<8x256xf32>
    %c0_37 = arith.constant 0 : index
    %c16 = arith.constant 16 : index
    %80 = vector.load %arg9[%c0_37, %c16] : memref<4x290xf32, #tpu.memory_space<vmem>>, vector<4x256xf32>
    %81 = vector.broadcast %50 : vector<1x256xf32> to vector<4x256xf32>
    %82 = arith.mulf %80, %81 : vector<4x256xf32>
    %c3 = arith.constant 3 : index
    %c0_38 = arith.constant 0 : index
    %c0_39 = arith.constant 0 : index
    %83 = vector.load %arg4[%c3, %c0_38, %c0_39] : memref<9x8x4xf32, #tpu.memory_space<vmem>>, vector<1x8x4xf32>
    %84 = vector.shape_cast %83 : vector<1x8x4xf32> to vector<8x4xf32>
    %cst_40 = arith.constant dense<0.000000e+00> : vector<8x256xf32>
    %85 = tpu.matmul %84, %82, %cst_40 {dimension_numbers = #tpu.dot_dimension_numbers<[1], [0], [0], [1], [0, 0, 1, 1], [], []>} : vector<8x4xf32>, vector<4x256xf32>, vector<8x256xf32> -> vector<8x256xf32>
    %86 = arith.addf %79, %85 : vector<8x256xf32>
    %c0_41 = arith.constant 0 : index
    %c17_42 = arith.constant 17 : index
    %87 = vector.load %arg9[%c0_41, %c17_42] : memref<4x290xf32, #tpu.memory_space<vmem>>, vector<4x256xf32>
    %c4 = arith.constant 4 : index
    %c0_43 = arith.constant 0 : index
    %c0_44 = arith.constant 0 : index
    %88 = vector.load %arg4[%c4, %c0_43, %c0_44] : memref<9x8x4xf32, #tpu.memory_space<vmem>>, vector<1x8x4xf32>
    %89 = vector.shape_cast %88 : vector<1x8x4xf32> to vector<8x4xf32>
    %cst_45 = arith.constant dense<0.000000e+00> : vector<8x256xf32>
    %90 = tpu.matmul %89, %87, %cst_45 {dimension_numbers = #tpu.dot_dimension_numbers<[1], [0], [0], [1], [0, 0, 1, 1], [], []>} : vector<8x4xf32>, vector<4x256xf32>, vector<8x256xf32> -> vector<8x256xf32>
    %91 = arith.addf %86, %90 : vector<8x256xf32>
    %c0_46 = arith.constant 0 : index
    %c18 = arith.constant 18 : index
    %92 = vector.load %arg9[%c0_46, %c18] : memref<4x290xf32, #tpu.memory_space<vmem>>, vector<4x256xf32>
    %93 = vector.broadcast %54 : vector<1x256xf32> to vector<4x256xf32>
    %94 = arith.mulf %92, %93 : vector<4x256xf32>
    %c5 = arith.constant 5 : index
    %c0_47 = arith.constant 0 : index
    %c0_48 = arith.constant 0 : index
    %95 = vector.load %arg4[%c5, %c0_47, %c0_48] : memref<9x8x4xf32, #tpu.memory_space<vmem>>, vector<1x8x4xf32>
    %96 = vector.shape_cast %95 : vector<1x8x4xf32> to vector<8x4xf32>
    %cst_49 = arith.constant dense<0.000000e+00> : vector<8x256xf32>
    %97 = tpu.matmul %96, %94, %cst_49 {dimension_numbers = #tpu.dot_dimension_numbers<[1], [0], [0], [1], [0, 0, 1, 1], [], []>} : vector<8x4xf32>, vector<4x256xf32>, vector<8x256xf32> -> vector<8x256xf32>
    %98 = arith.addf %91, %97 : vector<8x256xf32>
    %c0_50 = arith.constant 0 : index
    %c32 = arith.constant 32 : index
    %99 = vector.load %arg9[%c0_50, %c32] : memref<4x290xf32, #tpu.memory_space<vmem>>, vector<4x256xf32>
    %100 = vector.broadcast %50 : vector<1x256xf32> to vector<4x256xf32>
    %101 = arith.mulf %99, %100 : vector<4x256xf32>
    %c6 = arith.constant 6 : index
    %c0_51 = arith.constant 0 : index
    %c0_52 = arith.constant 0 : index
    %102 = vector.load %arg4[%c6, %c0_51, %c0_52] : memref<9x8x4xf32, #tpu.memory_space<vmem>>, vector<1x8x4xf32>
    %103 = vector.shape_cast %102 : vector<1x8x4xf32> to vector<8x4xf32>
    %cst_53 = arith.constant dense<0.000000e+00> : vector<8x256xf32>
    %104 = tpu.matmul %103, %101, %cst_53 {dimension_numbers = #tpu.dot_dimension_numbers<[1], [0], [0], [1], [0, 0, 1, 1], [], []>} : vector<8x4xf32>, vector<4x256xf32>, vector<8x256xf32> -> vector<8x256xf32>
    %105 = arith.addf %98, %104 : vector<8x256xf32>
    %c0_54 = arith.constant 0 : index
    %c33 = arith.constant 33 : index
    %106 = vector.load %arg9[%c0_54, %c33] : memref<4x290xf32, #tpu.memory_space<vmem>>, vector<4x256xf32>
    %c7 = arith.constant 7 : index
    %c0_55 = arith.constant 0 : index
    %c0_56 = arith.constant 0 : index
    %107 = vector.load %arg4[%c7, %c0_55, %c0_56] : memref<9x8x4xf32, #tpu.memory_space<vmem>>, vector<1x8x4xf32>
    %108 = vector.shape_cast %107 : vector<1x8x4xf32> to vector<8x4xf32>
    %cst_57 = arith.constant dense<0.000000e+00> : vector<8x256xf32>
    %109 = tpu.matmul %108, %106, %cst_57 {dimension_numbers = #tpu.dot_dimension_numbers<[1], [0], [0], [1], [0, 0, 1, 1], [], []>} : vector<8x4xf32>, vector<4x256xf32>, vector<8x256xf32> -> vector<8x256xf32>
    %110 = arith.addf %105, %109 : vector<8x256xf32>
    %c0_58 = arith.constant 0 : index
    %c34 = arith.constant 34 : index
    %111 = vector.load %arg9[%c0_58, %c34] : memref<4x290xf32, #tpu.memory_space<vmem>>, vector<4x256xf32>
    %112 = vector.broadcast %54 : vector<1x256xf32> to vector<4x256xf32>
    %113 = arith.mulf %111, %112 : vector<4x256xf32>
    %c8 = arith.constant 8 : index
    %c0_59 = arith.constant 0 : index
    %c0_60 = arith.constant 0 : index
    %114 = vector.load %arg4[%c8, %c0_59, %c0_60] : memref<9x8x4xf32, #tpu.memory_space<vmem>>, vector<1x8x4xf32>
    %115 = vector.shape_cast %114 : vector<1x8x4xf32> to vector<8x4xf32>
    %cst_61 = arith.constant dense<0.000000e+00> : vector<8x256xf32>
    %116 = tpu.matmul %115, %113, %cst_61 {dimension_numbers = #tpu.dot_dimension_numbers<[1], [0], [0], [1], [0, 0, 1, 1], [], []>} : vector<8x4xf32>, vector<4x256xf32>, vector<8x256xf32> -> vector<8x256xf32>
    %117 = arith.addf %110, %116 : vector<8x256xf32>
    %c0_62 = arith.constant 0 : index
    %c0_63 = arith.constant 0 : index
    %118 = vector.load %arg5[%c0_62, %c0_63] : memref<8x1xf32, #tpu.memory_space<vmem>>, vector<8x1xf32>
    %119 = vector.broadcast %118 : vector<8x1xf32> to vector<8x256xf32>
    %120 = arith.addf %117, %119 : vector<8x256xf32>
    %121 = arith.negf %120 : vector<8x256xf32>
    %122 = math.exp %121 : vector<8x256xf32>
    %cst_64 = arith.constant 1.000000e+00 : f32
    %123 = vector.broadcast %cst_64 : f32 to vector<8x256xf32>
    %124 = arith.addf %123, %122 : vector<8x256xf32>
    %125 = arith.divf %123, %124 : vector<8x256xf32>
    %126 = arith.mulf %120, %125 : vector<8x256xf32>
    %cst_65 = arith.constant 0.000000e+00 : f32
    %127 = vector.broadcast %cst_65 : f32 to vector<8x17xf32>
    %c0_66 = arith.constant 0 : index
    %c0_67 = arith.constant 0 : index
    %128 = vector.load %arg10[%c0_66, %c0_67] : memref<8x290xf32, #tpu.memory_space<vmem>>, vector<8x17xf32>
    tpu.vector_store %arg10[%c0_66, %c0_67], %127 {strides = array<i32>} : memref<8x290xf32, #tpu.memory_space<vmem>>, vector<8x17xf32>,
    %cst_68 = arith.constant 0.000000e+00 : f32
    %129 = vector.broadcast %cst_68 : f32 to vector<8x17xf32>
    %c0_69 = arith.constant 0 : index
    %c273_70 = arith.constant 273 : index
    %130 = vector.load %arg10[%c0_69, %c273_70] : memref<8x290xf32, #tpu.memory_space<vmem>>, vector<8x17xf32>
    tpu.vector_store %arg10[%c0_69, %c273_70], %129 {strides = array<i32>} : memref<8x290xf32, #tpu.memory_space<vmem>>, vector<8x17xf32>,
    %c0_71 = arith.constant 0 : index
    %c17_72 = arith.constant 17 : index
    %131 = vector.load %arg10[%c0_71, %c17_72] : memref<8x290xf32, #tpu.memory_space<vmem>>, vector<8x256xf32>
    tpu.vector_store %arg10[%c0_71, %c17_72], %126 {strides = array<i32>} : memref<8x290xf32, #tpu.memory_space<vmem>>, vector<8x256xf32>,
    %cst_73 = arith.constant 0.000000e+00 : f32
    %132 = vector.broadcast %cst_73 : f32 to vector<8x256xf32>
    %c0_74 = arith.constant 0 : index
    %c0_75 = arith.constant 0 : index
    %133 = vector.load %arg10[%c0_74, %c0_75] : memref<8x290xf32, #tpu.memory_space<vmem>>, vector<8x256xf32>
    %134 = vector.broadcast %50 : vector<1x256xf32> to vector<8x256xf32>
    %135 = arith.mulf %133, %134 : vector<8x256xf32>
    %c0_76 = arith.constant 0 : index
    %c0_77 = arith.constant 0 : index
    %c0_78 = arith.constant 0 : index
    %136 = vector.load %arg6[%c0_76, %c0_77, %c0_78] : memref<9x8x8xf32, #tpu.memory_space<vmem>>, vector<1x8x8xf32>
    %137 = vector.shape_cast %136 : vector<1x8x8xf32> to vector<8x8xf32>
    %cst_79 = arith.constant dense<0.000000e+00> : vector<8x256xf32>
    %138 = tpu.matmul %137, %135, %cst_79 {dimension_numbers = #tpu.dot_dimension_numbers<[1], [0], [0], [1], [0, 0, 1, 1], [], []>} : vector<8x8xf32>, vector<8x256xf32>, vector<8x256xf32> -> vector<8x256xf32>
    %139 = arith.addf %132, %138 : vector<8x256xf32>
    %c0_80 = arith.constant 0 : index
    %c1_81 = arith.constant 1 : index
    %140 = vector.load %arg10[%c0_80, %c1_81] : memref<8x290xf32, #tpu.memory_space<vmem>>, vector<8x256xf32>
    %c1_82 = arith.constant 1 : index
    %c0_83 = arith.constant 0 : index
    %c0_84 = arith.constant 0 : index
    %141 = vector.load %arg6[%c1_82, %c0_83, %c0_84] : memref<9x8x8xf32, #tpu.memory_space<vmem>>, vector<1x8x8xf32>
    %142 = vector.shape_cast %141 : vector<1x8x8xf32> to vector<8x8xf32>
    %cst_85 = arith.constant dense<0.000000e+00> : vector<8x256xf32>
    %143 = tpu.matmul %142, %140, %cst_85 {dimension_numbers = #tpu.dot_dimension_numbers<[1], [0], [0], [1], [0, 0, 1, 1], [], []>} : vector<8x8xf32>, vector<8x256xf32>, vector<8x256xf32> -> vector<8x256xf32>
    %144 = arith.addf %139, %143 : vector<8x256xf32>
    %c0_86 = arith.constant 0 : index
    %c2_87 = arith.constant 2 : index
    %145 = vector.load %arg10[%c0_86, %c2_87] : memref<8x290xf32, #tpu.memory_space<vmem>>, vector<8x256xf32>
    %146 = vector.broadcast %54 : vector<1x256xf32> to vector<8x256xf32>
    %147 = arith.mulf %145, %146 : vector<8x256xf32>
    %c2_88 = arith.constant 2 : index
    %c0_89 = arith.constant 0 : index
    %c0_90 = arith.constant 0 : index
    %148 = vector.load %arg6[%c2_88, %c0_89, %c0_90] : memref<9x8x8xf32, #tpu.memory_space<vmem>>, vector<1x8x8xf32>
    %149 = vector.shape_cast %148 : vector<1x8x8xf32> to vector<8x8xf32>
    %cst_91 = arith.constant dense<0.000000e+00> : vector<8x256xf32>
    %150 = tpu.matmul %149, %147, %cst_91 {dimension_numbers = #tpu.dot_dimension_numbers<[1], [0], [0], [1], [0, 0, 1, 1], [], []>} : vector<8x8xf32>, vector<8x256xf32>, vector<8x256xf32> -> vector<8x256xf32>
    %151 = arith.addf %144, %150 : vector<8x256xf32>
    %c0_92 = arith.constant 0 : index
    %c16_93 = arith.constant 16 : index
    %152 = vector.load %arg10[%c0_92, %c16_93] : memref<8x290xf32, #tpu.memory_space<vmem>>, vector<8x256xf32>
    %153 = vector.broadcast %50 : vector<1x256xf32> to vector<8x256xf32>
    %154 = arith.mulf %152, %153 : vector<8x256xf32>
    %c3_94 = arith.constant 3 : index
    %c0_95 = arith.constant 0 : index
    %c0_96 = arith.constant 0 : index
    %155 = vector.load %arg6[%c3_94, %c0_95, %c0_96] : memref<9x8x8xf32, #tpu.memory_space<vmem>>, vector<1x8x8xf32>
    %156 = vector.shape_cast %155 : vector<1x8x8xf32> to vector<8x8xf32>
    %cst_97 = arith.constant dense<0.000000e+00> : vector<8x256xf32>
    %157 = tpu.matmul %156, %154, %cst_97 {dimension_numbers = #tpu.dot_dimension_numbers<[1], [0], [0], [1], [0, 0, 1, 1], [], []>} : vector<8x8xf32>, vector<8x256xf32>, vector<8x256xf32> -> vector<8x256xf32>
    %158 = arith.addf %151, %157 : vector<8x256xf32>
    %c0_98 = arith.constant 0 : index
    %c17_99 = arith.constant 17 : index
    %159 = vector.load %arg10[%c0_98, %c17_99] : memref<8x290xf32, #tpu.memory_space<vmem>>, vector<8x256xf32>
    %c4_100 = arith.constant 4 : index
    %c0_101 = arith.constant 0 : index
    %c0_102 = arith.constant 0 : index
    %160 = vector.load %arg6[%c4_100, %c0_101, %c0_102] : memref<9x8x8xf32, #tpu.memory_space<vmem>>, vector<1x8x8xf32>
    %161 = vector.shape_cast %160 : vector<1x8x8xf32> to vector<8x8xf32>
    %cst_103 = arith.constant dense<0.000000e+00> : vector<8x256xf32>
    %162 = tpu.matmul %161, %159, %cst_103 {dimension_numbers = #tpu.dot_dimension_numbers<[1], [0], [0], [1], [0, 0, 1, 1], [], []>} : vector<8x8xf32>, vector<8x256xf32>, vector<8x256xf32> -> vector<8x256xf32>
    %163 = arith.addf %158, %162 : vector<8x256xf32>
    %c0_104 = arith.constant 0 : index
    %c18_105 = arith.constant 18 : index
    %164 = vector.load %arg10[%c0_104, %c18_105] : memref<8x290xf32, #tpu.memory_space<vmem>>, vector<8x256xf32>
    %165 = vector.broadcast %54 : vector<1x256xf32> to vector<8x256xf32>
    %166 = arith.mulf %164, %165 : vector<8x256xf32>
    %c5_106 = arith.constant 5 : index
    %c0_107 = arith.constant 0 : index
    %c0_108 = arith.constant 0 : index
    %167 = vector.load %arg6[%c5_106, %c0_107, %c0_108] : memref<9x8x8xf32, #tpu.memory_space<vmem>>, vector<1x8x8xf32>
    %168 = vector.shape_cast %167 : vector<1x8x8xf32> to vector<8x8xf32>
    %cst_109 = arith.constant dense<0.000000e+00> : vector<8x256xf32>
    %169 = tpu.matmul %168, %166, %cst_109 {dimension_numbers = #tpu.dot_dimension_numbers<[1], [0], [0], [1], [0, 0, 1, 1], [], []>} : vector<8x8xf32>, vector<8x256xf32>, vector<8x256xf32> -> vector<8x256xf32>
    %170 = arith.addf %163, %169 : vector<8x256xf32>
    %c0_110 = arith.constant 0 : index
    %c32_111 = arith.constant 32 : index
    %171 = vector.load %arg10[%c0_110, %c32_111] : memref<8x290xf32, #tpu.memory_space<vmem>>, vector<8x256xf32>
    %172 = vector.broadcast %50 : vector<1x256xf32> to vector<8x256xf32>
    %173 = arith.mulf %171, %172 : vector<8x256xf32>
    %c6_112 = arith.constant 6 : index
    %c0_113 = arith.constant 0 : index
    %c0_114 = arith.constant 0 : index
    %174 = vector.load %arg6[%c6_112, %c0_113, %c0_114] : memref<9x8x8xf32, #tpu.memory_space<vmem>>, vector<1x8x8xf32>
    %175 = vector.shape_cast %174 : vector<1x8x8xf32> to vector<8x8xf32>
    %cst_115 = arith.constant dense<0.000000e+00> : vector<8x256xf32>
    %176 = tpu.matmul %175, %173, %cst_115 {dimension_numbers = #tpu.dot_dimension_numbers<[1], [0], [0], [1], [0, 0, 1, 1], [], []>} : vector<8x8xf32>, vector<8x256xf32>, vector<8x256xf32> -> vector<8x256xf32>
    %177 = arith.addf %170, %176 : vector<8x256xf32>
    %c0_116 = arith.constant 0 : index
    %c33_117 = arith.constant 33 : index
    %178 = vector.load %arg10[%c0_116, %c33_117] : memref<8x290xf32, #tpu.memory_space<vmem>>, vector<8x256xf32>
    %c7_118 = arith.constant 7 : index
    %c0_119 = arith.constant 0 : index
    %c0_120 = arith.constant 0 : index
    %179 = vector.load %arg6[%c7_118, %c0_119, %c0_120] : memref<9x8x8xf32, #tpu.memory_space<vmem>>, vector<1x8x8xf32>
    %180 = vector.shape_cast %179 : vector<1x8x8xf32> to vector<8x8xf32>
    %cst_121 = arith.constant dense<0.000000e+00> : vector<8x256xf32>
    %181 = tpu.matmul %180, %178, %cst_121 {dimension_numbers = #tpu.dot_dimension_numbers<[1], [0], [0], [1], [0, 0, 1, 1], [], []>} : vector<8x8xf32>, vector<8x256xf32>, vector<8x256xf32> -> vector<8x256xf32>
    %182 = arith.addf %177, %181 : vector<8x256xf32>
    %c0_122 = arith.constant 0 : index
    %c34_123 = arith.constant 34 : index
    %183 = vector.load %arg10[%c0_122, %c34_123] : memref<8x290xf32, #tpu.memory_space<vmem>>, vector<8x256xf32>
    %184 = vector.broadcast %54 : vector<1x256xf32> to vector<8x256xf32>
    %185 = arith.mulf %183, %184 : vector<8x256xf32>
    %c8_124 = arith.constant 8 : index
    %c0_125 = arith.constant 0 : index
    %c0_126 = arith.constant 0 : index
    %186 = vector.load %arg6[%c8_124, %c0_125, %c0_126] : memref<9x8x8xf32, #tpu.memory_space<vmem>>, vector<1x8x8xf32>
    %187 = vector.shape_cast %186 : vector<1x8x8xf32> to vector<8x8xf32>
    %cst_127 = arith.constant dense<0.000000e+00> : vector<8x256xf32>
    %188 = tpu.matmul %187, %185, %cst_127 {dimension_numbers = #tpu.dot_dimension_numbers<[1], [0], [0], [1], [0, 0, 1, 1], [], []>} : vector<8x8xf32>, vector<8x256xf32>, vector<8x256xf32> -> vector<8x256xf32>
    %189 = arith.addf %182, %188 : vector<8x256xf32>
    %c0_128 = arith.constant 0 : index
    %c0_129 = arith.constant 0 : index
    %190 = vector.load %arg7[%c0_128, %c0_129] : memref<8x1xf32, #tpu.memory_space<vmem>>, vector<8x1xf32>
    %191 = vector.broadcast %190 : vector<8x1xf32> to vector<8x256xf32>
    %192 = arith.addf %189, %191 : vector<8x256xf32>
    %193 = arith.negf %192 : vector<8x256xf32>
    %194 = math.exp %193 : vector<8x256xf32>
    %cst_130 = arith.constant 1.000000e+00 : f32
    %195 = vector.broadcast %cst_130 : f32 to vector<8x256xf32>
    %196 = arith.addf %195, %194 : vector<8x256xf32>
    %197 = arith.divf %195, %196 : vector<8x256xf32>
    %198 = arith.mulf %192, %197 : vector<8x256xf32>
    %c0_131 = arith.constant 0 : index
    %c0_132 = arith.constant 0 : index
    %c0_133 = arith.constant 0 : index
    %199 = vector.load %arg8[%c0_131, %c0_132, %c0_133] : memref<1x8x256xf32, #tpu.memory_space<vmem>>, vector<1x8x256xf32>
    %200 = vector.shape_cast %199 : vector<1x8x256xf32> to vector<8x256xf32>
    %201 = vector.shape_cast %198 : vector<8x256xf32> to vector<1x8x256xf32>
    tpu.vector_store %arg8[%c0_131, %c0_132, %c0_133], %201 {strides = array<i32>} : memref<1x8x256xf32, #tpu.memory_space<vmem>>, vector<1x8x256xf32>,
    return
  }
  func.func @transform_0(%arg0: i32) -> (i32, i32, i32) {
    %c0_i32 = arith.constant 0 : i32
    %c0_i32_0 = arith.constant 0 : i32
    %c0_i32_1 = arith.constant 0 : i32
    return %arg0, %c0_i32, %c0_i32_0 : i32, i32, i32
  }
  func.func @transform_1(%arg0: i32) -> (i32, i32) {
    %c0_i32 = arith.constant 0 : i32
    %c0_i32_0 = arith.constant 0 : i32
    %c0_i32_1 = arith.constant 0 : i32
    return %c0_i32, %c0_i32_0 : i32, i32
  }
  func.func @transform_2(%arg0: i32) -> (i32, i32) {
    %c0_i32 = arith.constant 0 : i32
    %c0_i32_0 = arith.constant 0 : i32
    %c0_i32_1 = arith.constant 0 : i32
    return %c0_i32, %c0_i32_0 : i32, i32
  }
  func.func @transform_3(%arg0: i32) -> (i32, i32, i32) {
    %c0_i32 = arith.constant 0 : i32
    %c0_i32_0 = arith.constant 0 : i32
    %c0_i32_1 = arith.constant 0 : i32
    %c0_i32_2 = arith.constant 0 : i32
    return %c0_i32, %c0_i32_0, %c0_i32_1 : i32, i32, i32
  }
  func.func @transform_4(%arg0: i32) -> (i32, i32) {
    %c0_i32 = arith.constant 0 : i32
    %c0_i32_0 = arith.constant 0 : i32
    %c0_i32_1 = arith.constant 0 : i32
    return %c0_i32, %c0_i32_0 : i32, i32
  }
  func.func @transform_5(%arg0: i32) -> (i32, i32, i32) {
    %c0_i32 = arith.constant 0 : i32
    %c0_i32_0 = arith.constant 0 : i32
    %c0_i32_1 = arith.constant 0 : i32
    %c0_i32_2 = arith.constant 0 : i32
    return %c0_i32, %c0_i32_0, %c0_i32_1 : i32, i32, i32
  }
  func.func @transform_6(%arg0: i32) -> (i32, i32) {
    %c0_i32 = arith.constant 0 : i32
    %c0_i32_0 = arith.constant 0 : i32
    %c0_i32_1 = arith.constant 0 : i32
    return %c0_i32, %c0_i32_0 : i32, i32
  }
  func.func @transform_7(%arg0: i32) -> (i32, i32, i32) {
    %c0_i32 = arith.constant 0 : i32
    %c0_i32_0 = arith.constant 0 : i32
    %c0_i32_1 = arith.constant 0 : i32
    return %arg0, %c0_i32, %c0_i32_0 : i32, i32, i32
  }
}

</mosaic_0001>

<llo_original>
// kernel: myblock_forward.1
$region0: #{myblock_forward.1}
  #allocation0 [shape = 'u32[]', space=smem, size = 0x4, offset = 0x4, fixed_abs, tag = 'smem constant byte address 0x4 - core index']
  #allocation1 [shape = 'u32[72,128]{1,0:T(1,128)}', space=vmem, size = 0x9000, scoped, tag = 'internal scratch']
  #allocation2 [shape = 'f32[4,290]{1,0:T(4,128)}', space=vmem, size = 0x1800, scoped, tag = 'scratch operand']
  #allocation3 [shape = 'f32[8,290]{1,0:T(8,128)}', space=vmem, size = 0x3000, scoped, tag = 'scratch operand']
  %s0 = inlined_call_operand.vmem [shape: f32[2,4,256], index: 0, kind: input, shape index: {}]
  %s1 = inlined_call_operand.vmem [shape: f32[4,256], index: 1, kind: input, shape index: {}]
  %s2 = inlined_call_operand.vmem [shape: f32[4,256], index: 2, kind: input, shape index: {}]
  %s3 = inlined_call_operand.vmem [shape: f32[9,8,4], index: 3, kind: input, shape index: {}]
  %s4 = inlined_call_operand.vmem [shape: f32[8,1], index: 4, kind: input, shape index: {}]
  %s5 = inlined_call_operand.vmem [shape: f32[9,8,8], index: 5, kind: input, shape index: {}]
  %s6 = inlined_call_operand.vmem [shape: f32[8,1], index: 6, kind: input, shape index: {}]
  %s7 = inlined_call_operand.vmem [shape: f32[2,8,256], index: 7, kind: output, shape index: {}]
  %s8 = sld [smem:[#allocation0]]
  $region61: #{myblock_forward.1} parent=0
    _
  %s10 = ssub.s32 1, %s8
  %s11 = scalar_select 0, %s10, %s8
  loop: start=0, step=1, limit=4
  $region2: #{myblock_forward.1} parent=0 // loop_pre_header
    _
  $region3: #{myblock_forward.1} parent=0 // loop_header
    %s13 = sphi 0, %s17
    %p14 = scmp.ge.s32.totalorder %s13, 4
    %s23 = sphi 0, %s25
    %s26 = sphi 0, %s23
    %s27 = sphi 0, %s26
    %s43 = sphi 0, %s27
    %s47 = sphi 0, %s47
    %s49 = sphi 0, %s47
    %s50 = sphi 0, %s49
    %s64 = sphi 0, %s50
    %s68 = sphi 0, %s68
    %s70 = sphi 0, %s68
    %s71 = sphi 0, %s70
    %s85 = sphi 0, %s71
    %s89 = sphi 0, %s89
    %s91 = sphi 0, %s89
    %s92 = sphi 0, %s91
    %s106 = sphi 0, %s92
    %s110 = sphi 0, %s110
    %s112 = sphi 0, %s110
    %s113 = sphi 0, %s112
    %s127 = sphi 0, %s113
    %s131 = sphi 0, %s131
    %s133 = sphi 0, %s131
    %s134 = sphi 0, %s133
    %s148 = sphi 0, %s134
    %s152 = sphi 0, %s152
    %s154 = sphi 0, %s152
    %s155 = sphi 0, %s154
    %s169 = sphi 0, %s155
    %s175 = sphi 0, %s177
    %s178 = sphi 0, %s175
    %s179 = sphi 0, %s178
    %s195 = sphi 0, %s179
  $region4: #{myblock_forward.1} parent=0 // loop_header_branch
    %16 = sbr.rel (%p14) target = $region8
  $region5: #{myblock_forward.1} parent=0 // loop_body
    %s18 = ssub.s32 %s13, 1
    %s19 = ssub.s32 %s13, 2
    %s20 = sadd.s32 %s13, 1
    %s21 = ssub.s32 %s13, %s20
    %p22 = scmp.eq.s32.totalorder %s21, 0
    %s24 = sadd.s32 %s23, 1
    %s25 = scalar_select %p22, %s23, %s24
    %p28 = pneg %p22
    %p29 = scmp.eq.s32.totalorder %s13, 1
    %p30 = por %p28, %p29
    %p31 = scmp.ne.s32.totalorder %s23, %s26
    %p32 = scmp.eq.s32.totalorder %s13, 0
    %p33 = por %p31, %p32
    %p34 = scmp.ne.s32.totalorder %s23, %s26
    %p35 = scmp.eq.s32.totalorder %s18, 1
    %p36 = por %p34, %p35
    %p37 = scmp.ne.s32.totalorder %s26, %s27
    %p38 = scmp.eq.s32.totalorder %s18, 0
    %p39 = por %p37, %p38
    %p40 = scmp.ne.s32.totalorder %s26, %s27
    %p41 = scmp.eq.s32.totalorder %s19, 1
    %p42 = por %p40, %p41
    %p44 = scmp.ne.s32.totalorder %s27, %s43
    %p45 = scmp.eq.s32.totalorder %s19, 0
    %p46 = por %p44, %p45
    %s48 = sadd.s32 %s47, 1
    %p51 = scmp.eq.s32.totalorder %s13, 1
    %p52 = scmp.ne.s32.totalorder %s47, %s49
    %p53 = scmp.eq.s32.totalorder %s13, 0
    %p54 = por %p52, %p53
    %p55 = scmp.ne.s32.totalorder %s47, %s49
    %p56 = scmp.eq.s32.totalorder %s18, 1
    %p57 = por %p55, %p56
    %p58 = scmp.ne.s32.totalorder %s49, %s50
    %p59 = scmp.eq.s32.totalorder %s18, 0
    %p60 = por %p58, %p59
    %p61 = scmp.ne.s32.totalorder %s49, %s50
    %p62 = scmp.eq.s32.totalorder %s19, 1
    %p63 = por %p61, %p62
    %p65 = scmp.ne.s32.totalorder %s50, %s64
    %p66 = scmp.eq.s32.totalorder %s19, 0
    %p67 = por %p65, %p66
    %s69 = sadd.s32 %s68, 1
    %p72 = scmp.eq.s32.totalorder %s13, 1
    %p73 = scmp.ne.s32.totalorder %s68, %s70
    %p74 = scmp.eq.s32.totalorder %s13, 0
    %p75 = por %p73, %p74
    %p76 = scmp.ne.s32.totalorder %s68, %s70
    %p77 = scmp.eq.s32.totalorder %s18, 1
    %p78 = por %p76, %p77
    %p79 = scmp.ne.s32.totalorder %s70, %s71
    %p80 = scmp.eq.s32.totalorder %s18, 0
    %p81 = por %p79, %p80
    %p82 = scmp.ne.s32.totalorder %s70, %s71
    %p83 = scmp.eq.s32.totalorder %s19, 1
    %p84 = por %p82, %p83
    %p86 = scmp.ne.s32.totalorder %s71, %s85
    %p87 = scmp.eq.s32.totalorder %s19, 0
    %p88 = por %p86, %p87
    %s90 = sadd.s32 %s89, 1
    %p93 = scmp.eq.s32.totalorder %s13, 1
    %p94 = scmp.ne.s32.totalorder %s89, %s91
    %p95 = scmp.eq.s32.totalorder %s13, 0
    %p96 = por %p94, %p95
    %p97 = scmp.ne.s32.totalorder %s89, %s91
    %p98 = scmp.eq.s32.totalorder %s18, 1
    %p99 = por %p97, %p98
    %p100 = scmp.ne.s32.totalorder %s91, %s92
    %p101 = scmp.eq.s32.totalorder %s18, 0
    %p102 = por %p100, %p101
    %p103 = scmp.ne.s32.totalorder %s91, %s92
    %p104 = scmp.eq.s32.totalorder %s19, 1
    %p105 = por %p103, %p104
    %p107 = scmp.ne.s32.totalorder %s92, %s106
    %p108 = scmp.eq.s32.totalorder %s19, 0
    %p109 = por %p107, %p108
    %s111 = sadd.s32 %s110, 1
    %p114 = scmp.eq.s32.totalorder %s13, 1
    %p115 = scmp.ne.s32.totalorder %s110, %s112
    %p116 = scmp.eq.s32.totalorder %s13, 0
    %p117 = por %p115, %p116
    %p118 = scmp.ne.s32.totalorder %s110, %s112
    %p119 = scmp.eq.s32.totalorder %s18, 1
    %p120 = por %p118, %p119
    %p121 = scmp.ne.s32.totalorder %s112, %s113
    %p122 = scmp.eq.s32.totalorder %s18, 0
    %p123 = por %p121, %p122
    %p124 = scmp.ne.s32.totalorder %s112, %s113
    %p125 = scmp.eq.s32.totalorder %s19, 1
    %p126 = por %p124, %p125
    %p128 = scmp.ne.s32.totalorder %s113, %s127
    %p129 = scmp.eq.s32.totalorder %s19, 0
    %p130 = por %p128, %p129
    %s132 = sadd.s32 %s131, 1
    %p135 = scmp.eq.s32.totalorder %s13, 1
    %p136 = scmp.ne.s32.totalorder %s131, %s133
    %p137 = scmp.eq.s32.totalorder %s13, 0
    %p138 = por %p136, %p137
    %p139 = scmp.ne.s32.totalorder %s131, %s133
    %p140 = scmp.eq.s32.totalorder %s18, 1
    %p141 = por %p139, %p140
    %p142 = scmp.ne.s32.totalorder %s133, %s134
    %p143 = scmp.eq.s32.totalorder %s18, 0
    %p144 = por %p142, %p143
    %p145 = scmp.ne.s32.totalorder %s133, %s134
    %p146 = scmp.eq.s32.totalorder %s19, 1
    %p147 = por %p145, %p146
    %p149 = scmp.ne.s32.totalorder %s134, %s148
    %p150 = scmp.eq.s32.totalorder %s19, 0
    %p151 = por %p149, %p150
    %s153 = sadd.s32 %s152, 1
    %p156 = scmp.eq.s32.totalorder %s13, 1
    %p157 = scmp.ne.s32.totalorder %s152, %s154
    %p158 = scmp.eq.s32.totalorder %s13, 0
    %p159 = por %p157, %p158
    %p160 = scmp.ne.s32.totalorder %s152, %s154
    %p161 = scmp.eq.s32.totalorder %s18, 1
    %p162 = por %p160, %p161
    %p163 = scmp.ne.s32.totalorder %s154, %s155
    %p164 = scmp.eq.s32.totalorder %s18, 0
    %p165 = por %p163, %p164
    %p166 = scmp.ne.s32.totalorder %s154, %s155
    %p167 = scmp.eq.s32.totalorder %s19, 1
    %p168 = por %p166, %p167
    %p170 = scmp.ne.s32.totalorder %s155, %s169
    %p171 = scmp.eq.s32.totalorder %s19, 0
    %p172 = por %p170, %p171
    %s173 = ssub.s32 %s13, %s20
    %p174 = scmp.eq.s32.totalorder %s173, 0
    %s176 = sadd.s32 %s175, 1
    %s177 = scalar_select %p174, %s175, %s176
    %p180 = pneg %p174
    %p181 = scmp.eq.s32.totalorder %s13, 1
    %p182 = por %p180, %p181
    %p183 = scmp.ne.s32.totalorder %s175, %s178
    %p184 = scmp.eq.s32.totalorder %s13, 0
    %p185 = por %p183, %p184
    %p186 = scmp.ne.s32.totalorder %s175, %s178
    %p187 = scmp.eq.s32.totalorder %s18, 1
    %p188 = por %p186, %p187
    %p189 = scmp.ne.s32.totalorder %s178, %s179
    %p190 = scmp.eq.s32.totalorder %s18, 0
    %p191 = por %p189, %p190
    %p192 = scmp.ne.s32.totalorder %s178, %s179
    %p193 = scmp.eq.s32.totalorder %s19, 1
    %p194 = por %p192, %p193
    %p196 = scmp.ne.s32.totalorder %s179, %s195
    %p197 = scmp.eq.s32.totalorder %s19, 0
    %p198 = por %p196, %p197
    %p199 = scmp.le.s32.totalorder 1, %s13
    %p200 = scmp.lt.s32.totalorder %s13, 3
    %p201 = pnand %p199, %p200
    %p202 = pneg %p201
    // Predicated region
    $region9: #{myblock_forward.1} parent=5 // pred_check
      _
    $region10: #{myblock_forward.1} parent=5 // pred_check_branch
      %204 = sbr.rel (%p201) target = $region12
    $region11: #{myblock_forward.1} parent=5 // pred_region
      %s205 = ssub.s32 %s13, 1
      // Predicated region
      $region13: #{myblock_forward.1} parent=11 // pred_check
        %p206 = pneg %p60
      $region14: #{myblock_forward.1} parent=11 // pred_check_branch
        %208 = sbr.rel (%p206) target = $region16
      $region15: #{myblock_forward.1} parent=11 // pred_region
        _
      $region16: #{myblock_forward.1} parent=11 // pred_fallthru
        _
      // Predicated region
      $region17: #{myblock_forward.1} parent=11 // pred_check
        %p209 = pneg %p81
      $region18: #{myblock_forward.1} parent=11 // pred_check_branch
        %211 = sbr.rel (%p209) target = $region20
      $region19: #{myblock_forward.1} parent=11 // pred_region
        _
      $region20: #{myblock_forward.1} parent=11 // pred_fallthru
        _
      // Predicated region
      $region21: #{myblock_forward.1} parent=11 // pred_check
        %p212 = pneg %p102
      $region22: #{myblock_forward.1} parent=11 // pred_check_branch
        %214 = sbr.rel (%p212) target = $region24
      $region23: #{myblock_forward.1} parent=11 // pred_region
        _
      $region24: #{myblock_forward.1} parent=11 // pred_fallthru
        _
      // Predicated region
      $region25: #{myblock_forward.1} parent=11 // pred_check
        %p215 = pneg %p123
      $region26: #{myblock_forward.1} parent=11 // pred_check_branch
        %217 = sbr.rel (%p215) target = $region28
      $region27: #{myblock_forward.1} parent=11 // pred_region
        _
      $region28: #{myblock_forward.1} parent=11 // pred_fallthru
        _
      // Predicated region
      $region29: #{myblock_forward.1} parent=11 // pred_check
        %p218 = pneg %p144
      $region30: #{myblock_forward.1} parent=11 // pred_check_branch
        %220 = sbr.rel (%p218) target = $region32
      $region31: #{myblock_forward.1} parent=11 // pred_region
        _
      $region32: #{myblock_forward.1} parent=11 // pred_fallthru
        _
      // Predicated region
      $region33: #{myblock_forward.1} parent=11 // pred_check
        %p221 = pneg %p165
      $region34: #{myblock_forward.1} parent=11 // pred_check_branch
        %223 = sbr.rel (%p221) target = $region36
      $region35: #{myblock_forward.1} parent=11 // pred_region
        _
      $region36: #{myblock_forward.1} parent=11 // pred_fallthru
        _
    $region12: #{myblock_forward.1} parent=5 // pred_fallthru
      _
    %p224 = scmp.lt.s32.totalorder %s13, 2
    // Predicated region
    $region37: #{myblock_forward.1} parent=5 // pred_check
      %p225 = pneg %p224
    $region38: #{myblock_forward.1} parent=5 // pred_check_branch
      %227 = sbr.rel (%p225) target = $region40
    $region39: #{myblock_forward.1} parent=5 // pred_region
      // Predicated region
      $region41: #{myblock_forward.1} parent=39 // pred_check
        %p228 = pneg %p33
      $region42: #{myblock_forward.1} parent=39 // pred_check_branch
        %230 = sbr.rel (%p228) target = $region44
      $region43: #{myblock_forward.1} parent=39 // pred_region
        %p231 = scmp.lt.s32.totalorder %s13, 1
        %s232 = scalar_select %p231, %s13, 1
        %s233 = smul.addr %s232, 2
        %s234 = smul.addr %s233, 4
        %s235 = scalar_lea.vmem %s0, %s234
      $region44: #{myblock_forward.1} parent=39 // pred_fallthru
        _
    $region40: #{myblock_forward.1} parent=5 // pred_fallthru
      _
    %p236 = scmp.le.s32.totalorder 1, %s13
    %p237 = scmp.lt.s32.totalorder %s13, 3
    %p238 = pnand %p236, %p237
    %p239 = pneg %p238
    // Predicated region
    $region45: #{myblock_forward.1} parent=5 // pred_check
      _
    $region46: #{myblock_forward.1} parent=5 // pred_check_branch
      %241 = sbr.rel (%p238) target = $region48
    $region47: #{myblock_forward.1} parent=5 // pred_region
      %s242 = ssub.s32 %s13, 1
      %p243 = scmp.lt.s32.totalorder %s18, 1
      %s244 = scalar_select %p243, %s18, 1
      %s245 = smul.addr %s244, 2
      %s246 = smul.addr %s245, 4
      %s247 = scalar_lea.vmem %s0, %s246
      %p248 = pneg %p39
      %p249 = pneg %p36
      %p250 = pneg %p60
      %p251 = pneg %p57
      %p252 = pneg %p81
      %p253 = pneg %p78
      %p254 = pneg %p102
      %p255 = pneg %p99
      %p256 = pneg %p123
      %p257 = pneg %p120
      %p258 = pneg %p144
      %p259 = pneg %p141
      %p260 = pneg %p165
      %p261 = pneg %p162
      %p262 = pneg %p191
      %p263 = pneg %p188
      %p264 = scmp.lt.s32.totalorder %s18, 1
      %s265 = scalar_select %p264, %s18, 1
      %s266 = smul.addr %s265, 2
      %s267 = smul.addr %s266, 8
      %s268 = scalar_lea.vmem %s7, %s267
      %p269 = scmp.lt.s32.totalorder %s18, 1
      %s270 = scalar_select %p269, %s18, 1
      %s271 = smul.addr %s270, 2
      %s272 = smul.addr %s271, 4
      %s273 = scalar_lea.vmem %s0, %s272
      %p274 = scmp.lt.s32.totalorder %s18, 1
      %s275 = scalar_select %p274, %s18, 1
      %s276 = smul.addr %s275, 2
      %s277 = smul.addr %s276, 8
      %s278 = scalar_lea.vmem %s7, %s277
      %v279 = vld [vmem:[%s273] sm:$0xff]
      %281 = vst [vmem:[#allocation1] ss:$2 sm:$0xff] %v279
      %v282 = vld.sshfl [vmem:[#allocation1] sm:$0xff pattern:$0x75316420]
      %v283 = vld.sshfl [vmem:[#allocation1 + $0x8] sm:$0xff pattern:$0x75316420]
      %vm286 = vcmask 1043456
      %v287 = vsel %vm286, %v282, 0.0
      %v288 = vsel %vm286, %v283, 0.0
      %v289 = vadd.f32 %v287, %v288
      %290 = vadd.xlane.f32.xlu0 %v289
      %v291 = vpop.xlane.xlu0 %290
      %v292 = vrot.slane %v291, 4
      %v293 = vadd.f32 %v291, %v292
      %v294 = vrot.slane %v293, 2
      %v295 = vadd.f32 %v293, %v294
      %v296 = vrot.slane %v295, 1
      %v297 = vadd.f32 %v295, %v296
      %s298 = vtos %v297
      %v299 = vstv %s298
      %v300 = vrcp.pop 1024.0
      %v301 = vmul.f32 1024.0, %v300
      %v302 = vsub.f32 1.0, %v301
      %v303 = vmul.f32 %v300, %v302
      %v304 = vadd.f32 %v300, %v303
      %vm305 = vweird.f32 %v300
      %v306 = vsel %vm305, %v300, %v304
      %v307 = vmul.f32 %v299, %v306
      %v308 = vsub.f32 %v279, %v307
      %v309 = vmul.f32 %v308, %v308
      %311 = vst [vmem:[#allocation1] ss:$2 sm:$0xff] %v309
      %v312 = vld.sshfl [vmem:[#allocation1] sm:$0xff pattern:$0x75316420]
      %v313 = vld.sshfl [vmem:[#allocation1 + $0x8] sm:$0xff pattern:$0x75316420]
      %v316 = vsel %vm286, %v312, 0.0
      %v317 = vsel %vm286, %v313, 0.0
      %v318 = vadd.f32 %v316, %v317
      %319 = vadd.xlane.f32.xlu0 %v318
      %v320 = vpop.xlane.xlu0 %319
      %v321 = vrot.slane %v320, 4
      %v322 = vadd.f32 %v320, %v321
      %v323 = vrot.slane %v322, 2
      %v324 = vadd.f32 %v322, %v323
      %v325 = vrot.slane %v324, 1
      %v326 = vadd.f32 %v324, %v325
      %s327 = vtos %v326
      %v328 = vstv %s327
      %v329 = vmul.f32 %v328, %v306
      %v330 = vadd.f32 %v329, 1e-05
      %v331 = vrsqrt.pop %v330
      %v332 = vmul.f32 %v331, %v330
      %v333 = vmul.f32 %v332, %v331
      %v334 = vmul.f32 0.5, %v333
      %v335 = vsub.f32 1.5, %v334
      %v336 = vmul.f32 %v331, %v335
      %vm337 = vweird.f32 %v330
      %vm338 = vweird.f32 %v331
      %vm339 = vmor %vm337, %vm338
      %v340 = vsel %vm339, %v331, %v336
      %v341 = vmul.f32 %v308, %v340
      %v342 = vld [vmem:[%s1] sm:$0xff]
      %v343 = vmul.f32 %v341, %v342
      %v344 = vld [vmem:[%s2] sm:$0xff]
      %v345 = vadd.f32 %v343, %v344
      %v346 = vlaneseq
      %v347 = vand.u32 %v346, 127
      %v348 = vadd.s32 %v347, 128
      %vm349 = vcmp.lt.s32.totalorder %v347, 0
      %v350 = vsub.s32 0, %v347
      %v351 = vsel %vm349, %v350, %v347
      %v352 = vshrl.u32 %v351, 4
      %v353 = vand.u32 %v351, 15
      %v354 = vsub.s32 0, %v353
      %v355 = vsel %vm349, %v354, %v353
      %vm356 = vcmp.lt.s32.totalorder %v348, 0
      %v357 = vsub.s32 0, %v348
      %v358 = vsel %vm356, %v357, %v348
      %v359 = vshrl.u32 %v358, 4
      %v360 = vand.u32 %v358, 15
      %v361 = vsub.s32 0, %v360
      %v362 = vsel %vm356, %v361, %v360
      %vm363 = vcmp.ne.s32.totalorder %v355, 0
      %vm364 = vcmp.ne.s32.totalorder %v362, 0
      %vm365 = vcmp.lt.s32.totalorder %v355, 0
      %vm366 = vcmp.lt.s32.totalorder %v362, 0
      %vm367 = vmand %vm365, %vm363
      %vm368 = vmand %vm366, %vm364
      %v369 = vadd.s32 %v355, 16
      %v370 = vadd.s32 %v362, 16
      %v371 = vsel %vm367, %v369, %v355
      %v372 = vsel %vm368, %v370, %v362
      %vm373 = vcmp.ne.s32.totalorder %v371, 0
      %vm374 = vcmp.ne.s32.totalorder %v372, 0
      %v375 = vsel %vm373, 1, 0
      %v376 = vsel %vm374, 1, 0
      %v377 = vcvt.s32.f32 %v375
      %v378 = vcvt.s32.f32 %v376
      %vm379 = vcmp.ne.s32.totalorder %v371, 15
      %vm380 = vcmp.ne.s32.totalorder %v372, 15
      %v381 = vsel %vm379, 1, 0
      %v382 = vsel %vm380, 1, 0
      %v383 = vcvt.s32.f32 %v381
      %v384 = vcvt.s32.f32 %v382
      %vm385 = vcmask 134144
      %386 = vst.msk [vmem:[#allocation2] sm:$0xf] %vm385, 0.0
      %vm387 = vcmask 273544
      %388 = vst.msk [vmem:[#allocation2 + $0x8] sm:$0xf] %vm387, 0.0
      %390 = vrot.lane.b32.xlu0 %v345, 17
      %v391 = vpop.permute.xlu0 %390
      %v392 = vrot.slane %v391, 4
      %vm393 = vcmask 138240
      %v394 = vsel %vm393, %v392, %v391
      %vm397 = vcmask 1043592
      %vm398 = vcmask 1047556
      %vm399 = vmor %vm398, %vm397
      %400 = vst.msk [vmem:[#allocation2] sm:$0xff] %vm399, %v394
      %401 = vst.msk [vmem:[#allocation2 + $0x8] sm:$0xf] %vm385, %v392
      %v402 = vld [vmem:[#allocation2] sm:$0xff]
      %v405 = vrot.slane %v378, 4
      %v406 = vsel %vm286, %v377, %v405
      %v408 = vmul.f32 %v402, %v406
      %v409 = vld [vmem:[%s3] sm:$0xff]
      %v410 = vld [vmem:[#allocation2 + $0x8] sm:$0xf]
      %s411 = scalar_lea.vmem %s3, 8
      %v412 = vld [vmem:[%s411] sm:$0xff]
      %415 = vst [vmem:[#allocation1] ss:$2 sm:$0xff] %v402
      %s416 = scalar_lea.vmem [#allocation1], 16
      %417 = vst [vmem:[%s416] ss:$2 sm:$0xff] %v410
      %v418 = vld.sshfl [vmem:[#allocation1] sm:$0xff pattern:$0x75316420]
      %v419 = vld.sshfl [vmem:[#allocation1 + $0x8] sm:$0xff pattern:$0x75316420]
      %v420 = vld.sshfl [vmem:[#allocation1 + $0x10] sm:$0xff pattern:$0x75316420]
      %421 = vrot.lane.b32.xlu0 %v418, 127
      %v422 = vpop.permute.xlu0 %421
      %423 = vrot.lane.b32.xlu0 %v419, 127
      %v424 = vpop.permute.xlu0 %423
      %425 = vrot.lane.b32.xlu0 %v420, 127
      %v426 = vpop.permute.xlu0 %425
      %vm427 = vcmask 1039360
      %v428 = vsel %vm427, %v422, %v424
      %v429 = vsel %vm427, %v424, %v426
      %vm430 = vcmask 31744
      %v432 = vsel %vm430, %v412, 0
      %v434 = vsel %vm286, %v428, 0
      %v436 = vsel %vm286, %v429, 0
      %438 = vmatpush.msra.mxu0 0.0
      %439 = vmatpush.msra.mxu0 0.0
      %440 = vmatpush.msra.mxu0 0.0
      %441 = vmatpush.msra.mxu0 0.0
      %442 = vmatpush.msra.mxu0 0.0
      %443 = vmatpush.msra.mxu0 0.0
      %444 = vmatpush.msra.mxu0 0.0
      %445 = vmatpush.msra.mxu0 0.0
      %446 = vmatpush.msra.mxu0 0.0
      %447 = vmatpush.msra.mxu0 0.0
      %448 = vmatpush.msra.mxu0 0.0
      %449 = vmatpush.msra.mxu0 0.0
      %450 = vmatpush.msra.mxu0 0.0
      %451 = vmatpush.msra.mxu0 0.0
      %452 = vmatpush.msra.mxu0 0.0
      %453 = vmatpush.msra.mxu0 %v434
      %454 = vmatmul.f32.gmra.mxu0 %v432
      %v455 = vpop.f32.mrf.mxu0
      %v456 = vadd.f32 0.0, %v455
      %457 = vdwg.mxu0
      %458 = vmatpush.msra.mxu0 0.0
      %459 = vmatpush.msra.mxu0 0.0
      %460 = vmatpush.msra.mxu0 0.0
      %461 = vmatpush.msra.mxu0 0.0
      %462 = vmatpush.msra.mxu0 0.0
      %463 = vmatpush.msra.mxu0 0.0
      %464 = vmatpush.msra.mxu0 0.0
      %465 = vmatpush.msra.mxu0 0.0
      %466 = vmatpush.msra.mxu0 0.0
      %467 = vmatpush.msra.mxu0 0.0
      %468 = vmatpush.msra.mxu0 0.0
      %469 = vmatpush.msra.mxu0 0.0
      %470 = vmatpush.msra.mxu0 0.0
      %471 = vmatpush.msra.mxu0 0.0
      %472 = vmatpush.msra.mxu0 0.0
      %473 = vmatpush.msra.mxu0 %v436
      %474 = vmatmul.f32.gmra.mxu0 %v432
      %v475 = vpop.f32.mrf.mxu0
      %v476 = vadd.f32 0.0, %v475
      %477 = vdwg.mxu0
      %479 = vst [vmem:[#allocation1] ss:$2 sm:$0xff] %v408
      %v480 = vld.sshfl [vmem:[#allocation1] sm:$0xff pattern:$0x75316420]
      %v481 = vld.sshfl [vmem:[#allocation1 + $0x8] sm:$0xff pattern:$0x75316420]
      %v483 = vsel %vm430, %v409, 0
      %v485 = vsel %vm286, %v480, 0
      %v487 = vsel %vm286, %v481, 0
      %489 = vmatpush.msra.mxu0 0.0
      %490 = vmatpush.msra.mxu0 0.0
      %491 = vmatpush.msra.mxu0 0.0
      %492 = vmatpush.msra.mxu0 0.0
      %493 = vmatpush.msra.mxu0 0.0
      %494 = vmatpush.msra.mxu0 0.0
      %495 = vmatpush.msra.mxu0 0.0
      %496 = vmatpush.msra.mxu0 0.0
      %497 = vmatpush.msra.mxu0 0.0
      %498 = vmatpush.msra.mxu0 0.0
      %499 = vmatpush.msra.mxu0 0.0
      %500 = vmatpush.msra.mxu0 0.0
      %501 = vmatpush.msra.mxu0 0.0
      %502 = vmatpush.msra.mxu0 0.0
      %503 = vmatpush.msra.mxu0 0.0
      %504 = vmatpush.msra.mxu0 %v485
      %505 = vmatmul.f32.gmra.mxu0 %v483
      %v506 = vpop.f32.mrf.mxu0
      %v507 = vadd.f32 %v456, %v506
      %508 = vdwg.mxu0
      %509 = vmatpush.msra.mxu0 0.0
      %510 = vmatpush.msra.mxu0 0.0
      %511 = vmatpush.msra.mxu0 0.0
      %512 = vmatpush.msra.mxu0 0.0
      %513 = vmatpush.msra.mxu0 0.0
      %514 = vmatpush.msra.mxu0 0.0
      %515 = vmatpush.msra.mxu0 0.0
      %516 = vmatpush.msra.mxu0 0.0
      %517 = vmatpush.msra.mxu0 0.0
      %518 = vmatpush.msra.mxu0 0.0
      %519 = vmatpush.msra.mxu0 0.0
      %520 = vmatpush.msra.mxu0 0.0
      %521 = vmatpush.msra.mxu0 0.0
      %522 = vmatpush.msra.mxu0 0.0
      %523 = vmatpush.msra.mxu0 0.0
      %524 = vmatpush.msra.mxu0 %v487
      %525 = vmatmul.f32.gmra.mxu0 %v483
      %v526 = vpop.f32.mrf.mxu0
      %v527 = vadd.f32 %v476, %v526
      %528 = vdwg.mxu0
      %v529 = vld [vmem:[#allocation2] sm:$0xff]
      %v530 = vld [vmem:[#allocation2 + $0x8] sm:$0xf]
      %v533 = vrot.slane %v384, 4
      %v534 = vsel %vm286, %v383, %v533
      %535 = vrot.lane.b32.xlu0 %v534, 2
      %v536 = vpop.permute.xlu0 %535
      %v537 = vrot.slane %v536, 4
      %vm538 = vcmask 15360
      %v539 = vsel %vm538, %v537, %v536
      %v542 = vmul.f32 %v529, %v539
      %v543 = vmul.f32 %v530, %v537
      %s544 = scalar_lea.vmem %s3, 16
      %v545 = vld [vmem:[%s544] sm:$0xff]
      %548 = vst [vmem:[#allocation1] ss:$2 sm:$0xff] %v542
      %s549 = scalar_lea.vmem [#allocation1], 16
      %550 = vst [vmem:[%s549] ss:$2 sm:$0xff] %v543
      %v551 = vld.sshfl [vmem:[#allocation1] sm:$0xff pattern:$0x75316420]
      %v552 = vld.sshfl [vmem:[#allocation1 + $0x8] sm:$0xff pattern:$0x75316420]
      %v553 = vld.sshfl [vmem:[#allocation1 + $0x10] sm:$0xff pattern:$0x75316420]
      %554 = vrot.lane.b32.xlu0 %v551, 126
      %v555 = vpop.permute.xlu0 %554
      %556 = vrot.lane.b32.xlu0 %v552, 126
      %v557 = vpop.permute.xlu0 %556
      %558 = vrot.lane.b32.xlu0 %v553, 126
      %v559 = vpop.permute.xlu0 %558
      %vm560 = vcmask 1031168
      %v561 = vsel %vm560, %v555, %v557
      %v562 = vsel %vm560, %v557, %v559
      %v564 = vsel %vm430, %v545, 0
      %v566 = vsel %vm286, %v561, 0
      %v568 = vsel %vm286, %v562, 0
      %570 = vmatpush.msra.mxu0 0.0
      %571 = vmatpush.msra.mxu0 0.0
      %572 = vmatpush.msra.mxu0 0.0
      %573 = vmatpush.msra.mxu0 0.0
      %574 = vmatpush.msra.mxu0 0.0
      %575 = vmatpush.msra.mxu0 0.0
      %576 = vmatpush.msra.mxu0 0.0
      %577 = vmatpush.msra.mxu0 0.0
      %578 = vmatpush.msra.mxu0 0.0
      %579 = vmatpush.msra.mxu0 0.0
      %580 = vmatpush.msra.mxu0 0.0
      %581 = vmatpush.msra.mxu0 0.0
      %582 = vmatpush.msra.mxu0 0.0
      %583 = vmatpush.msra.mxu0 0.0
      %584 = vmatpush.msra.mxu0 0.0
      %585 = vmatpush.msra.mxu0 %v566
      %586 = vmatmul.f32.gmra.mxu0 %v564
      %v587 = vpop.f32.mrf.mxu0
      %v588 = vadd.f32 0.0, %v587
      %589 = vdwg.mxu0
      %590 = vmatpush.msra.mxu0 0.0
      %591 = vmatpush.msra.mxu0 0.0
      %592 = vmatpush.msra.mxu0 0.0
      %593 = vmatpush.msra.mxu0 0.0
      %594 = vmatpush.msra.mxu0 0.0
      %595 = vmatpush.msra.mxu0 0.0
      %596 = vmatpush.msra.mxu0 0.0
      %597 = vmatpush.msra.mxu0 0.0
      %598 = vmatpush.msra.mxu0 0.0
      %599 = vmatpush.msra.mxu0 0.0
      %600 = vmatpush.msra.mxu0 0.0
      %601 = vmatpush.msra.mxu0 0.0
      %602 = vmatpush.msra.mxu0 0.0
      %603 = vmatpush.msra.mxu0 0.0
      %604 = vmatpush.msra.mxu0 0.0
      %605 = vmatpush.msra.mxu0 %v568
      %606 = vmatmul.f32.gmra.mxu0 %v564
      %v607 = vpop.f32.mrf.mxu0
      %v608 = vadd.f32 0.0, %v607
      %609 = vdwg.mxu0
      %v610 = vadd.f32 %v507, %v588
      %v611 = vadd.f32 %v527, %v608
      %v612 = vld [vmem:[#allocation2] sm:$0xff]
      %v613 = vld [vmem:[#allocation2 + $0x8] sm:$0xf]
      %614 = vrot.lane.b32.xlu0 %v406, 16
      %v615 = vpop.permute.xlu0 %614
      %v616 = vrot.slane %v615, 4
      %vm617 = vcmask 130048
      %v618 = vsel %vm617, %v616, %v615
      %v621 = vmul.f32 %v612, %v618
      %v622 = vmul.f32 %v613, %v616
      %s623 = scalar_lea.vmem %s3, 24
      %v624 = vld [vmem:[%s623] sm:$0xff]
      %627 = vst [vmem:[#allocation1] ss:$2 sm:$0xff] %v621
      %s628 = scalar_lea.vmem [#allocation1], 16
      %629 = vst [vmem:[%s628] ss:$2 sm:$0xff] %v622
      %v630 = vld.sshfl [vmem:[#allocation1] sm:$0xff pattern:$0x75316420]
      %v631 = vld.sshfl [vmem:[#allocation1 + $0x8] sm:$0xff pattern:$0x75316420]
      %v632 = vld.sshfl [vmem:[#allocation1 + $0x10] sm:$0xff pattern:$0x75316420]
      %633 = vrot.lane.b32.xlu0 %v630, 112
      %v634 = vpop.permute.xlu0 %633
      %635 = vrot.lane.b32.xlu0 %v631, 112
      %v636 = vpop.permute.xlu0 %635
      %637 = vrot.lane.b32.xlu0 %v632, 112
      %v638 = vpop.permute.xlu0 %637
      %vm639 = vcmask 916480
      %v640 = vsel %vm639, %v634, %v636
      %v641 = vsel %vm639, %v636, %v638
      %v643 = vsel %vm430, %v624, 0
      %v645 = vsel %vm286, %v640, 0
      %v647 = vsel %vm286, %v641, 0
      %649 = vmatpush.msra.mxu0 0.0
      %650 = vmatpush.msra.mxu0 0.0
      %651 = vmatpush.msra.mxu0 0.0
      %652 = vmatpush.msra.mxu0 0.0
      %653 = vmatpush.msra.mxu0 0.0
      %654 = vmatpush.msra.mxu0 0.0
      %655 = vmatpush.msra.mxu0 0.0
      %656 = vmatpush.msra.mxu0 0.0
      %657 = vmatpush.msra.mxu0 0.0
      %658 = vmatpush.msra.mxu0 0.0
      %659 = vmatpush.msra.mxu0 0.0
      %660 = vmatpush.msra.mxu0 0.0
      %661 = vmatpush.msra.mxu0 0.0
      %662 = vmatpush.msra.mxu0 0.0
      %663 = vmatpush.msra.mxu0 0.0
      %664 = vmatpush.msra.mxu0 %v645
      %665 = vmatmul.f32.gmra.mxu0 %v643
      %v666 = vpop.f32.mrf.mxu0
      %v667 = vadd.f32 0.0, %v666
      %668 = vdwg.mxu0
      %669 = vmatpush.msra.mxu0 0.0
      %670 = vmatpush.msra.mxu0 0.0
      %671 = vmatpush.msra.mxu0 0.0
      %672 = vmatpush.msra.mxu0 0.0
      %673 = vmatpush.msra.mxu0 0.0
      %674 = vmatpush.msra.mxu0 0.0
      %675 = vmatpush.msra.mxu0 0.0
      %676 = vmatpush.msra.mxu0 0.0
      %677 = vmatpush.msra.mxu0 0.0
      %678 = vmatpush.msra.mxu0 0.0
      %679 = vmatpush.msra.mxu0 0.0
      %680 = vmatpush.msra.mxu0 0.0
      %681 = vmatpush.msra.mxu0 0.0
      %682 = vmatpush.msra.mxu0 0.0
      %683 = vmatpush.msra.mxu0 0.0
      %684 = vmatpush.msra.mxu0 %v647
      %685 = vmatmul.f32.gmra.mxu0 %v643
      %v686 = vpop.f32.mrf.mxu0
      %v687 = vadd.f32 0.0, %v686
      %688 = vdwg.mxu0
      %v689 = vadd.f32 %v610, %v667
      %v690 = vadd.f32 %v611, %v687
      %v691 = vld [vmem:[#allocation2] sm:$0xff]
      %v692 = vld [vmem:[#allocation2 + $0x8] sm:$0xf]
      %s693 = scalar_lea.vmem %s3, 32
      %v694 = vld [vmem:[%s693] sm:$0xff]
      %697 = vst [vmem:[#allocation1] ss:$2 sm:$0xff] %v691
      %s698 = scalar_lea.vmem [#allocation1], 16
      %699 = vst [vmem:[%s698] ss:$2 sm:$0xff] %v692
      %v700 = vld.sshfl [vmem:[#allocation1] sm:$0xff pattern:$0x75316420]
      %v701 = vld.sshfl [vmem:[#allocation1 + $0x8] sm:$0xff pattern:$0x75316420]
      %v702 = vld.sshfl [vmem:[#allocation1 + $0x10] sm:$0xff pattern:$0x75316420]
      %703 = vrot.lane.b32.xlu0 %v700, 111
      %v704 = vpop.permute.xlu0 %703
      %705 = vrot.lane.b32.xlu0 %v701, 111
      %v706 = vpop.permute.xlu0 %705
      %707 = vrot.lane.b32.xlu0 %v702, 111
      %v708 = vpop.permute.xlu0 %707
      %vm709 = vcmask 908288
      %v710 = vsel %vm709, %v704, %v706
      %v711 = vsel %vm709, %v706, %v708
      %v713 = vsel %vm430, %v694, 0
      %v715 = vsel %vm286, %v710, 0
      %v717 = vsel %vm286, %v711, 0
      %719 = vmatpush.msra.mxu0 0.0
      %720 = vmatpush.msra.mxu0 0.0
      %721 = vmatpush.msra.mxu0 0.0
      %722 = vmatpush.msra.mxu0 0.0
      %723 = vmatpush.msra.mxu0 0.0
      %724 = vmatpush.msra.mxu0 0.0
      %725 = vmatpush.msra.mxu0 0.0
      %726 = vmatpush.msra.mxu0 0.0
      %727 = vmatpush.msra.mxu0 0.0
      %728 = vmatpush.msra.mxu0 0.0
      %729 = vmatpush.msra.mxu0 0.0
      %730 = vmatpush.msra.mxu0 0.0
      %731 = vmatpush.msra.mxu0 0.0
      %732 = vmatpush.msra.mxu0 0.0
      %733 = vmatpush.msra.mxu0 0.0
      %734 = vmatpush.msra.mxu0 %v715
      %735 = vmatmul.f32.gmra.mxu0 %v713
      %v736 = vpop.f32.mrf.mxu0
      %v737 = vadd.f32 0.0, %v736
      %738 = vdwg.mxu0
      %739 = vmatpush.msra.mxu0 0.0
      %740 = vmatpush.msra.mxu0 0.0
      %741 = vmatpush.msra.mxu0 0.0
      %742 = vmatpush.msra.mxu0 0.0
      %743 = vmatpush.msra.mxu0 0.0
      %744 = vmatpush.msra.mxu0 0.0
      %745 = vmatpush.msra.mxu0 0.0
      %746 = vmatpush.msra.mxu0 0.0
      %747 = vmatpush.msra.mxu0 0.0
      %748 = vmatpush.msra.mxu0 0.0
      %749 = vmatpush.msra.mxu0 0.0
      %750 = vmatpush.msra.mxu0 0.0
      %751 = vmatpush.msra.mxu0 0.0
      %752 = vmatpush.msra.mxu0 0.0
      %753 = vmatpush.msra.mxu0 0.0
      %754 = vmatpush.msra.mxu0 %v717
      %755 = vmatmul.f32.gmra.mxu0 %v713
      %v756 = vpop.f32.mrf.mxu0
      %v757 = vadd.f32 0.0, %v756
      %758 = vdwg.mxu0
      %v759 = vadd.f32 %v689, %v737
      %v760 = vadd.f32 %v690, %v757
      %v761 = vld [vmem:[#allocation2] sm:$0xff]
      %v762 = vld [vmem:[#allocation2 + $0x8] sm:$0xf]
      %763 = vrot.lane.b32.xlu0 %v534, 18
      %v764 = vpop.permute.xlu0 %763
      %v765 = vrot.slane %v764, 4
      %vm766 = vcmask 146432
      %v767 = vsel %vm766, %v765, %v764
      %v770 = vmul.f32 %v761, %v767
      %v771 = vmul.f32 %v762, %v765
      %s772 = scalar_lea.vmem %s3, 40
      %v773 = vld [vmem:[%s772] sm:$0xff]
      %776 = vst [vmem:[#allocation1] ss:$2 sm:$0xff] %v770
      %s777 = scalar_lea.vmem [#allocation1], 16
      %778 = vst [vmem:[%s777] ss:$2 sm:$0xff] %v771
      %v779 = vld.sshfl [vmem:[#allocation1] sm:$0xff pattern:$0x75316420]
      %v780 = vld.sshfl [vmem:[#allocation1 + $0x8] sm:$0xff pattern:$0x75316420]
      %v781 = vld.sshfl [vmem:[#allocation1 + $0x10] sm:$0xff pattern:$0x75316420]
      %782 = vrot.lane.b32.xlu0 %v779, 110
      %v783 = vpop.permute.xlu0 %782
      %784 = vrot.lane.b32.xlu0 %v780, 110
      %v785 = vpop.permute.xlu0 %784
      %786 = vrot.lane.b32.xlu0 %v781, 110
      %v787 = vpop.permute.xlu0 %786
      %vm788 = vcmask 900096
      %v789 = vsel %vm788, %v783, %v785
      %v790 = vsel %vm788, %v785, %v787
      %v792 = vsel %vm430, %v773, 0
      %v794 = vsel %vm286, %v789, 0
      %v796 = vsel %vm286, %v790, 0
      %798 = vmatpush.msra.mxu0 0.0
      %799 = vmatpush.msra.mxu0 0.0
      %800 = vmatpush.msra.mxu0 0.0
      %801 = vmatpush.msra.mxu0 0.0
      %802 = vmatpush.msra.mxu0 0.0
      %803 = vmatpush.msra.mxu0 0.0
      %804 = vmatpush.msra.mxu0 0.0
      %805 = vmatpush.msra.mxu0 0.0
      %806 = vmatpush.msra.mxu0 0.0
      %807 = vmatpush.msra.mxu0 0.0
      %808 = vmatpush.msra.mxu0 0.0
      %809 = vmatpush.msra.mxu0 0.0
      %810 = vmatpush.msra.mxu0 0.0
      %811 = vmatpush.msra.mxu0 0.0
      %812 = vmatpush.msra.mxu0 0.0
      %813 = vmatpush.msra.mxu0 %v794
      %814 = vmatmul.f32.gmra.mxu0 %v792
      %v815 = vpop.f32.mrf.mxu0
      %v816 = vadd.f32 0.0, %v815
      %817 = vdwg.mxu0
      %818 = vmatpush.msra.mxu0 0.0
      %819 = vmatpush.msra.mxu0 0.0
      %820 = vmatpush.msra.mxu0 0.0
      %821 = vmatpush.msra.mxu0 0.0
      %822 = vmatpush.msra.mxu0 0.0
      %823 = vmatpush.msra.mxu0 0.0
      %824 = vmatpush.msra.mxu0 0.0
      %825 = vmatpush.msra.mxu0 0.0
      %826 = vmatpush.msra.mxu0 0.0
      %827 = vmatpush.msra.mxu0 0.0
      %828 = vmatpush.msra.mxu0 0.0
      %829 = vmatpush.msra.mxu0 0.0
      %830 = vmatpush.msra.mxu0 0.0
      %831 = vmatpush.msra.mxu0 0.0
      %832 = vmatpush.msra.mxu0 0.0
      %833 = vmatpush.msra.mxu0 %v796
      %834 = vmatmul.f32.gmra.mxu0 %v792
      %v835 = vpop.f32.mrf.mxu0
      %v836 = vadd.f32 0.0, %v835
      %837 = vdwg.mxu0
      %v838 = vadd.f32 %v759, %v816
      %v839 = vadd.f32 %v760, %v836
      %v840 = vld [vmem:[#allocation2] sm:$0xff]
      %v841 = vld [vmem:[#allocation2 + $0x8] sm:$0xf]
      %842 = vrot.lane.b32.xlu0 %v406, 32
      %v843 = vpop.permute.xlu0 %842
      %v844 = vrot.slane %v843, 4
      %vm845 = vcmask 261120
      %v846 = vsel %vm845, %v844, %v843
      %v849 = vmul.f32 %v840, %v846
      %v850 = vmul.f32 %v841, %v844
      %s851 = scalar_lea.vmem %s3, 48
      %v852 = vld [vmem:[%s851] sm:$0xff]
      %855 = vst [vmem:[#allocation1] ss:$2 sm:$0xff] %v849
      %s856 = scalar_lea.vmem [#allocation1], 16
      %857 = vst [vmem:[%s856] ss:$2 sm:$0xff] %v850
      %v858 = vld.sshfl [vmem:[#allocation1] sm:$0xff pattern:$0x75316420]
      %v859 = vld.sshfl [vmem:[#allocation1 + $0x8] sm:$0xff pattern:$0x75316420]
      %v860 = vld.sshfl [vmem:[#allocation1 + $0x10] sm:$0xff pattern:$0x75316420]
      %861 = vrot.lane.b32.xlu0 %v858, 96
      %v862 = vpop.permute.xlu0 %861
      %863 = vrot.lane.b32.xlu0 %v859, 96
      %v864 = vpop.permute.xlu0 %863
      %865 = vrot.lane.b32.xlu0 %v860, 96
      %v866 = vpop.permute.xlu0 %865
      %vm867 = vcmask 785408
      %v868 = vsel %vm867, %v862, %v864
      %v869 = vsel %vm867, %v864, %v866
      %v871 = vsel %vm430, %v852, 0
      %v873 = vsel %vm286, %v868, 0
      %v875 = vsel %vm286, %v869, 0
      %877 = vmatpush.msra.mxu0 0.0
      %878 = vmatpush.msra.mxu0 0.0
      %879 = vmatpush.msra.mxu0 0.0
      %880 = vmatpush.msra.mxu0 0.0
      %881 = vmatpush.msra.mxu0 0.0
      %882 = vmatpush.msra.mxu0 0.0
      %883 = vmatpush.msra.mxu0 0.0
      %884 = vmatpush.msra.mxu0 0.0
      %885 = vmatpush.msra.mxu0 0.0
      %886 = vmatpush.msra.mxu0 0.0
      %887 = vmatpush.msra.mxu0 0.0
      %888 = vmatpush.msra.mxu0 0.0
      %889 = vmatpush.msra.mxu0 0.0
      %890 = vmatpush.msra.mxu0 0.0
      %891 = vmatpush.msra.mxu0 0.0
      %892 = vmatpush.msra.mxu0 %v873
      %893 = vmatmul.f32.gmra.mxu0 %v871
      %v894 = vpop.f32.mrf.mxu0
      %v895 = vadd.f32 0.0, %v894
      %896 = vdwg.mxu0
      %897 = vmatpush.msra.mxu0 0.0
      %898 = vmatpush.msra.mxu0 0.0
      %899 = vmatpush.msra.mxu0 0.0
      %900 = vmatpush.msra.mxu0 0.0
      %901 = vmatpush.msra.mxu0 0.0
      %902 = vmatpush.msra.mxu0 0.0
      %903 = vmatpush.msra.mxu0 0.0
      %904 = vmatpush.msra.mxu0 0.0
      %905 = vmatpush.msra.mxu0 0.0
      %906 = vmatpush.msra.mxu0 0.0
      %907 = vmatpush.msra.mxu0 0.0
      %908 = vmatpush.msra.mxu0 0.0
      %909 = vmatpush.msra.mxu0 0.0
      %910 = vmatpush.msra.mxu0 0.0
      %911 = vmatpush.msra.mxu0 0.0
      %912 = vmatpush.msra.mxu0 %v875
      %913 = vmatmul.f32.gmra.mxu0 %v871
      %v914 = vpop.f32.mrf.mxu0
      %v915 = vadd.f32 0.0, %v914
      %916 = vdwg.mxu0
      %v917 = vadd.f32 %v838, %v895
      %v918 = vadd.f32 %v839, %v915
      %v919 = vld [vmem:[#allocation2] sm:$0xff]
      %v920 = vld [vmem:[#allocation2 + $0x8] sm:$0xf]
      %s921 = scalar_lea.vmem %s3, 56
      %v922 = vld [vmem:[%s921] sm:$0xff]
      %925 = vst [vmem:[#allocation1] ss:$2 sm:$0xff] %v919
      %s926 = scalar_lea.vmem [#allocation1], 16
      %927 = vst [vmem:[%s926] ss:$2 sm:$0xff] %v920
      %v928 = vld.sshfl [vmem:[#allocation1] sm:$0xff pattern:$0x75316420]
      %v929 = vld.sshfl [vmem:[#allocation1 + $0x8] sm:$0xff pattern:$0x75316420]
      %v930 = vld.sshfl [vmem:[#allocation1 + $0x10] sm:$0xff pattern:$0x75316420]
      %931 = vrot.lane.b32.xlu0 %v928, 95
      %v932 = vpop.permute.xlu0 %931
      %933 = vrot.lane.b32.xlu0 %v929, 95
      %v934 = vpop.permute.xlu0 %933
      %935 = vrot.lane.b32.xlu0 %v930, 95
      %v936 = vpop.permute.xlu0 %935
      %vm937 = vcmask 777216
      %v938 = vsel %vm937, %v932, %v934
      %v939 = vsel %vm937, %v934, %v936
      %v941 = vsel %vm430, %v922, 0
      %v943 = vsel %vm286, %v938, 0
      %v945 = vsel %vm286, %v939, 0
      %947 = vmatpush.msra.mxu0 0.0
      %948 = vmatpush.msra.mxu0 0.0
      %949 = vmatpush.msra.mxu0 0.0
      %950 = vmatpush.msra.mxu0 0.0
      %951 = vmatpush.msra.mxu0 0.0
      %952 = vmatpush.msra.mxu0 0.0
      %953 = vmatpush.msra.mxu0 0.0
      %954 = vmatpush.msra.mxu0 0.0
      %955 = vmatpush.msra.mxu0 0.0
      %956 = vmatpush.msra.mxu0 0.0
      %957 = vmatpush.msra.mxu0 0.0
      %958 = vmatpush.msra.mxu0 0.0
      %959 = vmatpush.msra.mxu0 0.0
      %960 = vmatpush.msra.mxu0 0.0
      %961 = vmatpush.msra.mxu0 0.0
      %962 = vmatpush.msra.mxu0 %v943
      %963 = vmatmul.f32.gmra.mxu0 %v941
      %v964 = vpop.f32.mrf.mxu0
      %v965 = vadd.f32 0.0, %v964
      %966 = vdwg.mxu0
      %967 = vmatpush.msra.mxu0 0.0
      %968 = vmatpush.msra.mxu0 0.0
      %969 = vmatpush.msra.mxu0 0.0
      %970 = vmatpush.msra.mxu0 0.0
      %971 = vmatpush.msra.mxu0 0.0
      %972 = vmatpush.msra.mxu0 0.0
      %973 = vmatpush.msra.mxu0 0.0
      %974 = vmatpush.msra.mxu0 0.0
      %975 = vmatpush.msra.mxu0 0.0
      %976 = vmatpush.msra.mxu0 0.0
      %977 = vmatpush.msra.mxu0 0.0
      %978 = vmatpush.msra.mxu0 0.0
      %979 = vmatpush.msra.mxu0 0.0
      %980 = vmatpush.msra.mxu0 0.0
      %981 = vmatpush.msra.mxu0 0.0
      %982 = vmatpush.msra.mxu0 %v945
      %983 = vmatmul.f32.gmra.mxu0 %v941
      %v984 = vpop.f32.mrf.mxu0
      %v985 = vadd.f32 0.0, %v984
      %986 = vdwg.mxu0
      %v987 = vadd.f32 %v917, %v965
      %v988 = vadd.f32 %v918, %v985
      %v989 = vld [vmem:[#allocation2] sm:$0xff]
      %v990 = vld [vmem:[#allocation2 + $0x8] sm:$0xf]
      %991 = vrot.lane.b32.xlu0 %v534, 34
      %v992 = vpop.permute.xlu0 %991
      %v993 = vrot.slane %v992, 4
      %vm994 = vcmask 277504
      %v995 = vsel %vm994, %v993, %v992
      %v998 = vmul.f32 %v989, %v995
      %v999 = vmul.f32 %v990, %v993
      %s1000 = scalar_lea.vmem %s3, 64
      %v1001 = vld [vmem:[%s1000] sm:$0xff]
      %1004 = vst [vmem:[#allocation1] ss:$2 sm:$0xff] %v998
      %s1005 = scalar_lea.vmem [#allocation1], 16
      %1006 = vst [vmem:[%s1005] ss:$2 sm:$0xff] %v999
      %v1007 = vld.sshfl [vmem:[#allocation1] sm:$0xff pattern:$0x75316420]
      %v1008 = vld.sshfl [vmem:[#allocation1 + $0x8] sm:$0xff pattern:$0x75316420]
      %v1009 = vld.sshfl [vmem:[#allocation1 + $0x10] sm:$0xff pattern:$0x75316420]
      %1010 = vrot.lane.b32.xlu0 %v1007, 94
      %v1011 = vpop.permute.xlu0 %1010
      %1012 = vrot.lane.b32.xlu0 %v1008, 94
      %v1013 = vpop.permute.xlu0 %1012
      %1014 = vrot.lane.b32.xlu0 %v1009, 94
      %v1015 = vpop.permute.xlu0 %1014
      %vm1016 = vcmask 769024
      %v1017 = vsel %vm1016, %v1011, %v1013
      %v1018 = vsel %vm1016, %v1013, %v1015
      %v1020 = vsel %vm430, %v1001, 0
      %v1022 = vsel %vm286, %v1017, 0
      %v1024 = vsel %vm286, %v1018, 0
      %1026 = vmatpush.msra.mxu0 0.0
      %1027 = vmatpush.msra.mxu0 0.0
      %1028 = vmatpush.msra.mxu0 0.0
      %1029 = vmatpush.msra.mxu0 0.0
      %1030 = vmatpush.msra.mxu0 0.0
      %1031 = vmatpush.msra.mxu0 0.0
      %1032 = vmatpush.msra.mxu0 0.0
      %1033 = vmatpush.msra.mxu0 0.0
      %1034 = vmatpush.msra.mxu0 0.0
      %1035 = vmatpush.msra.mxu0 0.0
      %1036 = vmatpush.msra.mxu0 0.0
      %1037 = vmatpush.msra.mxu0 0.0
      %1038 = vmatpush.msra.mxu0 0.0
      %1039 = vmatpush.msra.mxu0 0.0
      %1040 = vmatpush.msra.mxu0 0.0
      %1041 = vmatpush.msra.mxu0 %v1022
      %1042 = vmatmul.f32.gmra.mxu0 %v1020
      %v1043 = vpop.f32.mrf.mxu0
      %v1044 = vadd.f32 0.0, %v1043
      %1045 = vdwg.mxu0
      %1046 = vmatpush.msra.mxu0 0.0
      %1047 = vmatpush.msra.mxu0 0.0
      %1048 = vmatpush.msra.mxu0 0.0
      %1049 = vmatpush.msra.mxu0 0.0
      %1050 = vmatpush.msra.mxu0 0.0
      %1051 = vmatpush.msra.mxu0 0.0
      %1052 = vmatpush.msra.mxu0 0.0
      %1053 = vmatpush.msra.mxu0 0.0
      %1054 = vmatpush.msra.mxu0 0.0
      %1055 = vmatpush.msra.mxu0 0.0
      %1056 = vmatpush.msra.mxu0 0.0
      %1057 = vmatpush.msra.mxu0 0.0
      %1058 = vmatpush.msra.mxu0 0.0
      %1059 = vmatpush.msra.mxu0 0.0
      %1060 = vmatpush.msra.mxu0 0.0
      %1061 = vmatpush.msra.mxu0 %v1024
      %1062 = vmatmul.f32.gmra.mxu0 %v1020
      %v1063 = vpop.f32.mrf.mxu0
      %v1064 = vadd.f32 0.0, %v1063
      %1065 = vdwg.mxu0
      %v1066 = vadd.f32 %v987, %v1044
      %v1067 = vadd.f32 %v988, %v1064
      %v1068 = vld [vmem:[%s4] sm:$0xff]
      %1070 = vset.pattern.permute.xlu0 0
      %1071 = vperm.xlu0 %1070, %v1068
      %v1072 = vpop.permute.xlu0 %1071
      %v1074 = vadd.f32 %v1066, %v1072
      %v1075 = vadd.f32 %v1067, %v1072
      %v1076 = vxor.u32 %v1074, 2147483648
      %v1077 = vxor.u32 %v1075, 2147483648
      %v1078 = vmul.f32 %v1076, 1.442695
      %v1079 = vpow.pop %v1078
      %v1080 = vmul.f32 %v1077, 1.442695
      %v1081 = vpow.pop %v1080
      %v1082 = vadd.f32 %v1079, 1.0
      %v1083 = vadd.f32 %v1081, 1.0
      %v1084 = vrcp.pop %v1082
      %v1085 = vmul.f32 %v1082, %v1084
      %v1086 = vsub.f32 1.0, %v1085
      %v1087 = vmul.f32 %v1084, %v1086
      %v1088 = vadd.f32 %v1084, %v1087
      %vm1089 = vweird.f32 %v1082
      %vm1090 = vweird.f32 %v1084
      %vm1091 = vmor %vm1089, %vm1090
      %v1092 = vsel %vm1091, %v1084, %v1088
      %v1093 = vand.u32 2147483647, %v1082
      %vm1094 = vcmp.eq.f32.partialorder %v1093, 8.507059e+37
      %v1095 = vand.u32 %v1082, 2147483648
      %v1096 = vor.u32 1.1754944e-38, %v1095
      %v1097 = vsel %vm1094, %v1096, %v1092
      %v1098 = vmul.f32 1.0, %v1097
      %v1099 = vrcp.pop %v1083
      %v1100 = vmul.f32 %v1083, %v1099
      %v1101 = vsub.f32 1.0, %v1100
      %v1102 = vmul.f32 %v1099, %v1101
      %v1103 = vadd.f32 %v1099, %v1102
      %vm1104 = vweird.f32 %v1083
      %vm1105 = vweird.f32 %v1099
      %vm1106 = vmor %vm1104, %vm1105
      %v1107 = vsel %vm1106, %v1099, %v1103
      %v1108 = vand.u32 2147483647, %v1083
      %vm1109 = vcmp.eq.f32.partialorder %v1108, 8.507059e+37
      %v1110 = vand.u32 %v1083, 2147483648
      %v1111 = vor.u32 1.1754944e-38, %v1110
      %v1112 = vsel %vm1109, %v1111, %v1107
      %v1113 = vmul.f32 1.0, %v1112
      %v1114 = vmul.f32 %v1074, %v1098
      %v1115 = vmul.f32 %v1075, %v1113
      %1116 = vst.msk [vmem:[#allocation3] sm:$0xff] %vm393, 0.0
      %vm1117 = vcmask 277640
      %1118 = vst.msk [vmem:[#allocation3 + $0x10] sm:$0xff] %vm1117, 0.0
      %1121 = vrot.lane.b32.xlu0 %v1114, 17
      %v1122 = vpop.permute.xlu0 %1121
      %1123 = vrot.lane.b32.xlu0 %v1115, 17
      %v1124 = vpop.permute.xlu0 %1123
      %v1125 = vsel %vm393, %v1122, %v1124
      %vm1129 = vcmask 1047688
      %1130 = vst.msk [vmem:[#allocation3] sm:$0xff] %vm1129, %v1122
      %1131 = vst [vmem:[#allocation3 + $0x8] sm:$0xff] %v1125
      %1132 = vst.msk [vmem:[#allocation3 + $0x10] sm:$0xff] %vm393, %v1124
      %v1133 = vld [vmem:[#allocation3] sm:$0xff]
      %v1134 = vld [vmem:[#allocation3 + $0x8] sm:$0xff]
      %v1135 = vmul.f32 %v1133, %v377
      %v1136 = vmul.f32 %v1134, %v378
      %v1137 = vld [vmem:[%s5] sm:$0xff]
      %v1138 = vld [vmem:[#allocation3 + $0x10] sm:$0xff]
      %s1139 = scalar_lea.vmem %s5, 8
      %v1140 = vld [vmem:[%s1139] sm:$0xff]
      %1144 = vrot.lane.b32.xlu0 %v1133, 127
      %v1145 = vpop.permute.xlu0 %1144
      %1146 = vrot.lane.b32.xlu0 %v1134, 127
      %v1147 = vpop.permute.xlu0 %1146
      %1148 = vrot.lane.b32.xlu0 %v1138, 127
      %v1149 = vpop.permute.xlu0 %1148
      %v1150 = vsel %vm427, %v1145, %v1147
      %v1151 = vsel %vm427, %v1147, %v1149
      %vm1154 = vcmask 64512
      %v1156 = vsel %vm1154, %v1140, 0
      %1158 = vmatpush.msra.mxu0 0.0
      %1159 = vmatpush.msra.mxu0 0.0
      %1160 = vmatpush.msra.mxu0 0.0
      %1161 = vmatpush.msra.mxu0 0.0
      %1162 = vmatpush.msra.mxu0 0.0
      %1163 = vmatpush.msra.mxu0 0.0
      %1164 = vmatpush.msra.mxu0 0.0
      %1165 = vmatpush.msra.mxu0 0.0
      %1166 = vmatpush.msra.mxu0 0.0
      %1167 = vmatpush.msra.mxu0 0.0
      %1168 = vmatpush.msra.mxu0 0.0
      %1169 = vmatpush.msra.mxu0 0.0
      %1170 = vmatpush.msra.mxu0 0.0
      %1171 = vmatpush.msra.mxu0 0.0
      %1172 = vmatpush.msra.mxu0 0.0
      %1173 = vmatpush.msra.mxu0 %v1150
      %1174 = vmatmul.f32.gmra.mxu0 %v1156
      %v1175 = vpop.f32.mrf.mxu0
      %v1176 = vadd.f32 0.0, %v1175
      %1177 = vdwg.mxu0
      %1178 = vmatpush.msra.mxu0 0.0
      %1179 = vmatpush.msra.mxu0 0.0
      %1180 = vmatpush.msra.mxu0 0.0
      %1181 = vmatpush.msra.mxu0 0.0
      %1182 = vmatpush.msra.mxu0 0.0
      %1183 = vmatpush.msra.mxu0 0.0
      %1184 = vmatpush.msra.mxu0 0.0
      %1185 = vmatpush.msra.mxu0 0.0
      %1186 = vmatpush.msra.mxu0 0.0
      %1187 = vmatpush.msra.mxu0 0.0
      %1188 = vmatpush.msra.mxu0 0.0
      %1189 = vmatpush.msra.mxu0 0.0
      %1190 = vmatpush.msra.mxu0 0.0
      %1191 = vmatpush.msra.mxu0 0.0
      %1192 = vmatpush.msra.mxu0 0.0
      %1193 = vmatpush.msra.mxu0 %v1151
      %1194 = vmatmul.f32.gmra.mxu0 %v1156
      %v1195 = vpop.f32.mrf.mxu0
      %v1196 = vadd.f32 0.0, %v1195
      %1197 = vdwg.mxu0
      %v1199 = vsel %vm1154, %v1137, 0
      %1201 = vmatpush.msra.mxu0 0.0
      %1202 = vmatpush.msra.mxu0 0.0
      %1203 = vmatpush.msra.mxu0 0.0
      %1204 = vmatpush.msra.mxu0 0.0
      %1205 = vmatpush.msra.mxu0 0.0
      %1206 = vmatpush.msra.mxu0 0.0
      %1207 = vmatpush.msra.mxu0 0.0
      %1208 = vmatpush.msra.mxu0 0.0
      %1209 = vmatpush.msra.mxu0 0.0
      %1210 = vmatpush.msra.mxu0 0.0
      %1211 = vmatpush.msra.mxu0 0.0
      %1212 = vmatpush.msra.mxu0 0.0
      %1213 = vmatpush.msra.mxu0 0.0
      %1214 = vmatpush.msra.mxu0 0.0
      %1215 = vmatpush.msra.mxu0 0.0
      %1216 = vmatpush.msra.mxu0 %v1135
      %1217 = vmatmul.f32.gmra.mxu0 %v1199
      %v1218 = vpop.f32.mrf.mxu0
      %v1219 = vadd.f32 %v1176, %v1218
      %1220 = vdwg.mxu0
      %1221 = vmatpush.msra.mxu0 0.0
      %1222 = vmatpush.msra.mxu0 0.0
      %1223 = vmatpush.msra.mxu0 0.0
      %1224 = vmatpush.msra.mxu0 0.0
      %1225 = vmatpush.msra.mxu0 0.0
      %1226 = vmatpush.msra.mxu0 0.0
      %1227 = vmatpush.msra.mxu0 0.0
      %1228 = vmatpush.msra.mxu0 0.0
      %1229 = vmatpush.msra.mxu0 0.0
      %1230 = vmatpush.msra.mxu0 0.0
      %1231 = vmatpush.msra.mxu0 0.0
      %1232 = vmatpush.msra.mxu0 0.0
      %1233 = vmatpush.msra.mxu0 0.0
      %1234 = vmatpush.msra.mxu0 0.0
      %1235 = vmatpush.msra.mxu0 0.0
      %1236 = vmatpush.msra.mxu0 %v1136
      %1237 = vmatmul.f32.gmra.mxu0 %v1199
      %v1238 = vpop.f32.mrf.mxu0
      %v1239 = vadd.f32 %v1196, %v1238
      %1240 = vdwg.mxu0
      %1241 = vrot.lane.b32.xlu0 %v383, 2
      %v1242 = vpop.permute.xlu0 %1241
      %1243 = vrot.lane.b32.xlu0 %v384, 2
      %v1244 = vpop.permute.xlu0 %1243
      %v1245 = vsel %vm538, %v1242, %v1244
      %v1249 = vmul.f32 %v1133, %v1242
      %v1250 = vmul.f32 %v1134, %v1245
      %v1251 = vmul.f32 %v1138, %v1244
      %s1252 = scalar_lea.vmem %s5, 16
      %v1253 = vld [vmem:[%s1252] sm:$0xff]
      %1257 = vrot.lane.b32.xlu0 %v1249, 126
      %v1258 = vpop.permute.xlu0 %1257
      %1259 = vrot.lane.b32.xlu0 %v1250, 126
      %v1260 = vpop.permute.xlu0 %1259
      %1261 = vrot.lane.b32.xlu0 %v1251, 126
      %v1262 = vpop.permute.xlu0 %1261
      %v1263 = vsel %vm560, %v1258, %v1260
      %v1264 = vsel %vm560, %v1260, %v1262
      %v1268 = vsel %vm1154, %v1253, 0
      %1270 = vmatpush.msra.mxu0 0.0
      %1271 = vmatpush.msra.mxu0 0.0
      %1272 = vmatpush.msra.mxu0 0.0
      %1273 = vmatpush.msra.mxu0 0.0
      %1274 = vmatpush.msra.mxu0 0.0
      %1275 = vmatpush.msra.mxu0 0.0
      %1276 = vmatpush.msra.mxu0 0.0
      %1277 = vmatpush.msra.mxu0 0.0
      %1278 = vmatpush.msra.mxu0 0.0
      %1279 = vmatpush.msra.mxu0 0.0
      %1280 = vmatpush.msra.mxu0 0.0
      %1281 = vmatpush.msra.mxu0 0.0
      %1282 = vmatpush.msra.mxu0 0.0
      %1283 = vmatpush.msra.mxu0 0.0
      %1284 = vmatpush.msra.mxu0 0.0
      %1285 = vmatpush.msra.mxu0 %v1263
      %1286 = vmatmul.f32.gmra.mxu0 %v1268
      %v1287 = vpop.f32.mrf.mxu0
      %v1288 = vadd.f32 0.0, %v1287
      %1289 = vdwg.mxu0
      %1290 = vmatpush.msra.mxu0 0.0
      %1291 = vmatpush.msra.mxu0 0.0
      %1292 = vmatpush.msra.mxu0 0.0
      %1293 = vmatpush.msra.mxu0 0.0
      %1294 = vmatpush.msra.mxu0 0.0
      %1295 = vmatpush.msra.mxu0 0.0
      %1296 = vmatpush.msra.mxu0 0.0
      %1297 = vmatpush.msra.mxu0 0.0
      %1298 = vmatpush.msra.mxu0 0.0
      %1299 = vmatpush.msra.mxu0 0.0
      %1300 = vmatpush.msra.mxu0 0.0
      %1301 = vmatpush.msra.mxu0 0.0
      %1302 = vmatpush.msra.mxu0 0.0
      %1303 = vmatpush.msra.mxu0 0.0
      %1304 = vmatpush.msra.mxu0 0.0
      %1305 = vmatpush.msra.mxu0 %v1264
      %1306 = vmatmul.f32.gmra.mxu0 %v1268
      %v1307 = vpop.f32.mrf.mxu0
      %v1308 = vadd.f32 0.0, %v1307
      %1309 = vdwg.mxu0
      %v1310 = vadd.f32 %v1219, %v1288
      %v1311 = vadd.f32 %v1239, %v1308
      %1312 = vrot.lane.b32.xlu0 %v377, 16
      %v1313 = vpop.permute.xlu0 %1312
      %1314 = vrot.lane.b32.xlu0 %v378, 16
      %v1315 = vpop.permute.xlu0 %1314
      %v1316 = vsel %vm617, %v1313, %v1315
      %v1320 = vmul.f32 %v1133, %v1313
      %v1321 = vmul.f32 %v1134, %v1316
      %v1322 = vmul.f32 %v1138, %v1315
      %s1323 = scalar_lea.vmem %s5, 24
      %v1324 = vld [vmem:[%s1323] sm:$0xff]
      %1328 = vrot.lane.b32.xlu0 %v1320, 112
      %v1329 = vpop.permute.xlu0 %1328
      %1330 = vrot.lane.b32.xlu0 %v1321, 112
      %v1331 = vpop.permute.xlu0 %1330
      %1332 = vrot.lane.b32.xlu0 %v1322, 112
      %v1333 = vpop.permute.xlu0 %1332
      %v1334 = vsel %vm639, %v1329, %v1331
      %v1335 = vsel %vm639, %v1331, %v1333
      %v1339 = vsel %vm1154, %v1324, 0
      %1341 = vmatpush.msra.mxu0 0.0
      %1342 = vmatpush.msra.mxu0 0.0
      %1343 = vmatpush.msra.mxu0 0.0
      %1344 = vmatpush.msra.mxu0 0.0
      %1345 = vmatpush.msra.mxu0 0.0
      %1346 = vmatpush.msra.mxu0 0.0
      %1347 = vmatpush.msra.mxu0 0.0
      %1348 = vmatpush.msra.mxu0 0.0
      %1349 = vmatpush.msra.mxu0 0.0
      %1350 = vmatpush.msra.mxu0 0.0
      %1351 = vmatpush.msra.mxu0 0.0
      %1352 = vmatpush.msra.mxu0 0.0
      %1353 = vmatpush.msra.mxu0 0.0
      %1354 = vmatpush.msra.mxu0 0.0
      %1355 = vmatpush.msra.mxu0 0.0
      %1356 = vmatpush.msra.mxu0 %v1334
      %1357 = vmatmul.f32.gmra.mxu0 %v1339
      %v1358 = vpop.f32.mrf.mxu0
      %v1359 = vadd.f32 0.0, %v1358
      %1360 = vdwg.mxu0
      %1361 = vmatpush.msra.mxu0 0.0
      %1362 = vmatpush.msra.mxu0 0.0
      %1363 = vmatpush.msra.mxu0 0.0
      %1364 = vmatpush.msra.mxu0 0.0
      %1365 = vmatpush.msra.mxu0 0.0
      %1366 = vmatpush.msra.mxu0 0.0
      %1367 = vmatpush.msra.mxu0 0.0
      %1368 = vmatpush.msra.mxu0 0.0
      %1369 = vmatpush.msra.mxu0 0.0
      %1370 = vmatpush.msra.mxu0 0.0
      %1371 = vmatpush.msra.mxu0 0.0
      %1372 = vmatpush.msra.mxu0 0.0
      %1373 = vmatpush.msra.mxu0 0.0
      %1374 = vmatpush.msra.mxu0 0.0
      %1375 = vmatpush.msra.mxu0 0.0
      %1376 = vmatpush.msra.mxu0 %v1335
      %1377 = vmatmul.f32.gmra.mxu0 %v1339
      %v1378 = vpop.f32.mrf.mxu0
      %v1379 = vadd.f32 0.0, %v1378
      %1380 = vdwg.mxu0
      %v1381 = vadd.f32 %v1310, %v1359
      %v1382 = vadd.f32 %v1311, %v1379
      %s1383 = scalar_lea.vmem %s5, 32
      %v1384 = vld [vmem:[%s1383] sm:$0xff]
      %1385 = vrot.lane.b32.xlu0 %v1133, 111
      %v1386 = vpop.permute.xlu0 %1385
      %1387 = vrot.lane.b32.xlu0 %v1134, 111
      %v1388 = vpop.permute.xlu0 %1387
      %1389 = vrot.lane.b32.xlu0 %v1138, 111
      %v1390 = vpop.permute.xlu0 %1389
      %v1391 = vsel %vm709, %v1386, %v1388
      %v1392 = vsel %vm709, %v1388, %v1390
      %v1396 = vsel %vm1154, %v1384, 0
      %1398 = vmatpush.msra.mxu0 0.0
      %1399 = vmatpush.msra.mxu0 0.0
      %1400 = vmatpush.msra.mxu0 0.0
      %1401 = vmatpush.msra.mxu0 0.0
      %1402 = vmatpush.msra.mxu0 0.0
      %1403 = vmatpush.msra.mxu0 0.0
      %1404 = vmatpush.msra.mxu0 0.0
      %1405 = vmatpush.msra.mxu0 0.0
      %1406 = vmatpush.msra.mxu0 0.0
      %1407 = vmatpush.msra.mxu0 0.0
      %1408 = vmatpush.msra.mxu0 0.0
      %1409 = vmatpush.msra.mxu0 0.0
      %1410 = vmatpush.msra.mxu0 0.0
      %1411 = vmatpush.msra.mxu0 0.0
      %1412 = vmatpush.msra.mxu0 0.0
      %1413 = vmatpush.msra.mxu0 %v1391
      %1414 = vmatmul.f32.gmra.mxu0 %v1396
      %v1415 = vpop.f32.mrf.mxu0
      %v1416 = vadd.f32 0.0, %v1415
      %1417 = vdwg.mxu0
      %1418 = vmatpush.msra.mxu0 0.0
      %1419 = vmatpush.msra.mxu0 0.0
      %1420 = vmatpush.msra.mxu0 0.0
      %1421 = vmatpush.msra.mxu0 0.0
      %1422 = vmatpush.msra.mxu0 0.0
      %1423 = vmatpush.msra.mxu0 0.0
      %1424 = vmatpush.msra.mxu0 0.0
      %1425 = vmatpush.msra.mxu0 0.0
      %1426 = vmatpush.msra.mxu0 0.0
      %1427 = vmatpush.msra.mxu0 0.0
      %1428 = vmatpush.msra.mxu0 0.0
      %1429 = vmatpush.msra.mxu0 0.0
      %1430 = vmatpush.msra.mxu0 0.0
      %1431 = vmatpush.msra.mxu0 0.0
      %1432 = vmatpush.msra.mxu0 0.0
      %1433 = vmatpush.msra.mxu0 %v1392
      %1434 = vmatmul.f32.gmra.mxu0 %v1396
      %v1435 = vpop.f32.mrf.mxu0
      %v1436 = vadd.f32 0.0, %v1435
      %1437 = vdwg.mxu0
      %v1438 = vadd.f32 %v1381, %v1416
      %v1439 = vadd.f32 %v1382, %v1436
      %1440 = vrot.lane.b32.xlu0 %v383, 18
      %v1441 = vpop.permute.xlu0 %1440
      %1442 = vrot.lane.b32.xlu0 %v384, 18
      %v1443 = vpop.permute.xlu0 %1442
      %v1444 = vsel %vm766, %v1441, %v1443
      %v1448 = vmul.f32 %v1133, %v1441
      %v1449 = vmul.f32 %v1134, %v1444
      %v1450 = vmul.f32 %v1138, %v1443
      %s1451 = scalar_lea.vmem %s5, 40
      %v1452 = vld [vmem:[%s1451] sm:$0xff]
      %1456 = vrot.lane.b32.xlu0 %v1448, 110
      %v1457 = vpop.permute.xlu0 %1456
      %1458 = vrot.lane.b32.xlu0 %v1449, 110
      %v1459 = vpop.permute.xlu0 %1458
      %1460 = vrot.lane.b32.xlu0 %v1450, 110
      %v1461 = vpop.permute.xlu0 %1460
      %v1462 = vsel %vm788, %v1457, %v1459
      %v1463 = vsel %vm788, %v1459, %v1461
      %v1467 = vsel %vm1154, %v1452, 0
      %1469 = vmatpush.msra.mxu0 0.0
      %1470 = vmatpush.msra.mxu0 0.0
      %1471 = vmatpush.msra.mxu0 0.0
      %1472 = vmatpush.msra.mxu0 0.0
      %1473 = vmatpush.msra.mxu0 0.0
      %1474 = vmatpush.msra.mxu0 0.0
      %1475 = vmatpush.msra.mxu0 0.0
      %1476 = vmatpush.msra.mxu0 0.0
      %1477 = vmatpush.msra.mxu0 0.0
      %1478 = vmatpush.msra.mxu0 0.0
      %1479 = vmatpush.msra.mxu0 0.0
      %1480 = vmatpush.msra.mxu0 0.0
      %1481 = vmatpush.msra.mxu0 0.0
      %1482 = vmatpush.msra.mxu0 0.0
      %1483 = vmatpush.msra.mxu0 0.0
      %1484 = vmatpush.msra.mxu0 %v1462
      %1485 = vmatmul.f32.gmra.mxu0 %v1467
      %v1486 = vpop.f32.mrf.mxu0
      %v1487 = vadd.f32 0.0, %v1486
      %1488 = vdwg.mxu0
      %1489 = vmatpush.msra.mxu0 0.0
      %1490 = vmatpush.msra.mxu0 0.0
      %1491 = vmatpush.msra.mxu0 0.0
      %1492 = vmatpush.msra.mxu0 0.0
      %1493 = vmatpush.msra.mxu0 0.0
      %1494 = vmatpush.msra.mxu0 0.0
      %1495 = vmatpush.msra.mxu0 0.0
      %1496 = vmatpush.msra.mxu0 0.0
      %1497 = vmatpush.msra.mxu0 0.0
      %1498 = vmatpush.msra.mxu0 0.0
      %1499 = vmatpush.msra.mxu0 0.0
      %1500 = vmatpush.msra.mxu0 0.0
      %1501 = vmatpush.msra.mxu0 0.0
      %1502 = vmatpush.msra.mxu0 0.0
      %1503 = vmatpush.msra.mxu0 0.0
      %1504 = vmatpush.msra.mxu0 %v1463
      %1505 = vmatmul.f32.gmra.mxu0 %v1467
      %v1506 = vpop.f32.mrf.mxu0
      %v1507 = vadd.f32 0.0, %v1506
      %1508 = vdwg.mxu0
      %v1509 = vadd.f32 %v1438, %v1487
      %v1510 = vadd.f32 %v1439, %v1507
      %1511 = vrot.lane.b32.xlu0 %v377, 32
      %v1512 = vpop.permute.xlu0 %1511
      %1513 = vrot.lane.b32.xlu0 %v378, 32
      %v1514 = vpop.permute.xlu0 %1513
      %v1515 = vsel %vm845, %v1512, %v1514
      %v1519 = vmul.f32 %v1133, %v1512
      %v1520 = vmul.f32 %v1134, %v1515
      %v1521 = vmul.f32 %v1138, %v1514
      %s1522 = scalar_lea.vmem %s5, 48
      %v1523 = vld [vmem:[%s1522] sm:$0xff]
      %1527 = vrot.lane.b32.xlu0 %v1519, 96
      %v1528 = vpop.permute.xlu0 %1527
      %1529 = vrot.lane.b32.xlu0 %v1520, 96
      %v1530 = vpop.permute.xlu0 %1529
      %1531 = vrot.lane.b32.xlu0 %v1521, 96
      %v1532 = vpop.permute.xlu0 %1531
      %v1533 = vsel %vm867, %v1528, %v1530
      %v1534 = vsel %vm867, %v1530, %v1532
      %v1538 = vsel %vm1154, %v1523, 0
      %1540 = vmatpush.msra.mxu0 0.0
      %1541 = vmatpush.msra.mxu0 0.0
      %1542 = vmatpush.msra.mxu0 0.0
      %1543 = vmatpush.msra.mxu0 0.0
      %1544 = vmatpush.msra.mxu0 0.0
      %1545 = vmatpush.msra.mxu0 0.0
      %1546 = vmatpush.msra.mxu0 0.0
      %1547 = vmatpush.msra.mxu0 0.0
      %1548 = vmatpush.msra.mxu0 0.0
      %1549 = vmatpush.msra.mxu0 0.0
      %1550 = vmatpush.msra.mxu0 0.0
      %1551 = vmatpush.msra.mxu0 0.0
      %1552 = vmatpush.msra.mxu0 0.0
      %1553 = vmatpush.msra.mxu0 0.0
      %1554 = vmatpush.msra.mxu0 0.0
      %1555 = vmatpush.msra.mxu0 %v1533
      %1556 = vmatmul.f32.gmra.mxu0 %v1538
      %v1557 = vpop.f32.mrf.mxu0
      %v1558 = vadd.f32 0.0, %v1557
      %1559 = vdwg.mxu0
      %1560 = vmatpush.msra.mxu0 0.0
      %1561 = vmatpush.msra.mxu0 0.0
      %1562 = vmatpush.msra.mxu0 0.0
      %1563 = vmatpush.msra.mxu0 0.0
      %1564 = vmatpush.msra.mxu0 0.0
      %1565 = vmatpush.msra.mxu0 0.0
      %1566 = vmatpush.msra.mxu0 0.0
      %1567 = vmatpush.msra.mxu0 0.0
      %1568 = vmatpush.msra.mxu0 0.0
      %1569 = vmatpush.msra.mxu0 0.0
      %1570 = vmatpush.msra.mxu0 0.0
      %1571 = vmatpush.msra.mxu0 0.0
      %1572 = vmatpush.msra.mxu0 0.0
      %1573 = vmatpush.msra.mxu0 0.0
      %1574 = vmatpush.msra.mxu0 0.0
      %1575 = vmatpush.msra.mxu0 %v1534
      %1576 = vmatmul.f32.gmra.mxu0 %v1538
      %v1577 = vpop.f32.mrf.mxu0
      %v1578 = vadd.f32 0.0, %v1577
      %1579 = vdwg.mxu0
      %v1580 = vadd.f32 %v1509, %v1558
      %v1581 = vadd.f32 %v1510, %v1578
      %s1582 = scalar_lea.vmem %s5, 56
      %v1583 = vld [vmem:[%s1582] sm:$0xff]
      %1584 = vrot.lane.b32.xlu0 %v1133, 95
      %v1585 = vpop.permute.xlu0 %1584
      %1586 = vrot.lane.b32.xlu0 %v1134, 95
      %v1587 = vpop.permute.xlu0 %1586
      %1588 = vrot.lane.b32.xlu0 %v1138, 95
      %v1589 = vpop.permute.xlu0 %1588
      %v1590 = vsel %vm937, %v1585, %v1587
      %v1591 = vsel %vm937, %v1587, %v1589
      %v1595 = vsel %vm1154, %v1583, 0
      %1597 = vmatpush.msra.mxu0 0.0
      %1598 = vmatpush.msra.mxu0 0.0
      %1599 = vmatpush.msra.mxu0 0.0
      %1600 = vmatpush.msra.mxu0 0.0
      %1601 = vmatpush.msra.mxu0 0.0
      %1602 = vmatpush.msra.mxu0 0.0
      %1603 = vmatpush.msra.mxu0 0.0
      %1604 = vmatpush.msra.mxu0 0.0
      %1605 = vmatpush.msra.mxu0 0.0
      %1606 = vmatpush.msra.mxu0 0.0
      %1607 = vmatpush.msra.mxu0 0.0
      %1608 = vmatpush.msra.mxu0 0.0
      %1609 = vmatpush.msra.mxu0 0.0
      %1610 = vmatpush.msra.mxu0 0.0
      %1611 = vmatpush.msra.mxu0 0.0
      %1612 = vmatpush.msra.mxu0 %v1590
      %1613 = vmatmul.f32.gmra.mxu0 %v1595
      %v1614 = vpop.f32.mrf.mxu0
      %v1615 = vadd.f32 0.0, %v1614
      %1616 = vdwg.mxu0
      %1617 = vmatpush.msra.mxu0 0.0
      %1618 = vmatpush.msra.mxu0 0.0
      %1619 = vmatpush.msra.mxu0 0.0
      %1620 = vmatpush.msra.mxu0 0.0
      %1621 = vmatpush.msra.mxu0 0.0
      %1622 = vmatpush.msra.mxu0 0.0
      %1623 = vmatpush.msra.mxu0 0.0
      %1624 = vmatpush.msra.mxu0 0.0
      %1625 = vmatpush.msra.mxu0 0.0
      %1626 = vmatpush.msra.mxu0 0.0
      %1627 = vmatpush.msra.mxu0 0.0
      %1628 = vmatpush.msra.mxu0 0.0
      %1629 = vmatpush.msra.mxu0 0.0
      %1630 = vmatpush.msra.mxu0 0.0
      %1631 = vmatpush.msra.mxu0 0.0
      %1632 = vmatpush.msra.mxu0 %v1591
      %1633 = vmatmul.f32.gmra.mxu0 %v1595
      %v1634 = vpop.f32.mrf.mxu0
      %v1635 = vadd.f32 0.0, %v1634
      %1636 = vdwg.mxu0
      %v1637 = vadd.f32 %v1580, %v1615
      %v1638 = vadd.f32 %v1581, %v1635
      %1639 = vrot.lane.b32.xlu0 %v383, 34
      %v1640 = vpop.permute.xlu0 %1639
      %1641 = vrot.lane.b32.xlu0 %v384, 34
      %v1642 = vpop.permute.xlu0 %1641
      %v1643 = vsel %vm994, %v1640, %v1642
      %v1647 = vmul.f32 %v1133, %v1640
      %v1648 = vmul.f32 %v1134, %v1643
      %v1649 = vmul.f32 %v1138, %v1642
      %s1650 = scalar_lea.vmem %s5, 64
      %v1651 = vld [vmem:[%s1650] sm:$0xff]
      %1655 = vrot.lane.b32.xlu0 %v1647, 94
      %v1656 = vpop.permute.xlu0 %1655
      %1657 = vrot.lane.b32.xlu0 %v1648, 94
      %v1658 = vpop.permute.xlu0 %1657
      %1659 = vrot.lane.b32.xlu0 %v1649, 94
      %v1660 = vpop.permute.xlu0 %1659
      %v1661 = vsel %vm1016, %v1656, %v1658
      %v1662 = vsel %vm1016, %v1658, %v1660
      %v1666 = vsel %vm1154, %v1651, 0
      %1668 = vmatpush.msra.mxu0 0.0
      %1669 = vmatpush.msra.mxu0 0.0
      %1670 = vmatpush.msra.mxu0 0.0
      %1671 = vmatpush.msra.mxu0 0.0
      %1672 = vmatpush.msra.mxu0 0.0
      %1673 = vmatpush.msra.mxu0 0.0
      %1674 = vmatpush.msra.mxu0 0.0
      %1675 = vmatpush.msra.mxu0 0.0
      %1676 = vmatpush.msra.mxu0 0.0
      %1677 = vmatpush.msra.mxu0 0.0
      %1678 = vmatpush.msra.mxu0 0.0
      %1679 = vmatpush.msra.mxu0 0.0
      %1680 = vmatpush.msra.mxu0 0.0
      %1681 = vmatpush.msra.mxu0 0.0
      %1682 = vmatpush.msra.mxu0 0.0
      %1683 = vmatpush.msra.mxu0 %v1661
      %1684 = vmatmul.f32.gmra.mxu0 %v1666
      %v1685 = vpop.f32.mrf.mxu0
      %v1686 = vadd.f32 0.0, %v1685
      %1687 = vdwg.mxu0
      %1688 = vmatpush.msra.mxu0 0.0
      %1689 = vmatpush.msra.mxu0 0.0
      %1690 = vmatpush.msra.mxu0 0.0
      %1691 = vmatpush.msra.mxu0 0.0
      %1692 = vmatpush.msra.mxu0 0.0
      %1693 = vmatpush.msra.mxu0 0.0
      %1694 = vmatpush.msra.mxu0 0.0
      %1695 = vmatpush.msra.mxu0 0.0
      %1696 = vmatpush.msra.mxu0 0.0
      %1697 = vmatpush.msra.mxu0 0.0
      %1698 = vmatpush.msra.mxu0 0.0
      %1699 = vmatpush.msra.mxu0 0.0
      %1700 = vmatpush.msra.mxu0 0.0
      %1701 = vmatpush.msra.mxu0 0.0
      %1702 = vmatpush.msra.mxu0 0.0
      %1703 = vmatpush.msra.mxu0 %v1662
      %1704 = vmatmul.f32.gmra.mxu0 %v1666
      %v1705 = vpop.f32.mrf.mxu0
      %v1706 = vadd.f32 0.0, %v1705
      %1707 = vdwg.mxu0
      %v1708 = vadd.f32 %v1637, %v1686
      %v1709 = vadd.f32 %v1638, %v1706
      %v1710 = vld [vmem:[%s6] sm:$0xff]
      %1712 = vset.pattern.permute.xlu0 0
      %1713 = vperm.xlu0 %1712, %v1710
      %v1714 = vpop.permute.xlu0 %1713
      %v1716 = vadd.f32 %v1708, %v1714
      %v1717 = vadd.f32 %v1709, %v1714
      %v1718 = vxor.u32 %v1716, 2147483648
      %v1719 = vxor.u32 %v1717, 2147483648
      %v1720 = vmul.f32 %v1718, 1.442695
      %v1721 = vpow.pop %v1720
      %v1722 = vmul.f32 %v1719, 1.442695
      %v1723 = vpow.pop %v1722
      %v1724 = vadd.f32 %v1721, 1.0
      %v1725 = vadd.f32 %v1723, 1.0
      %v1726 = vrcp.pop %v1724
      %v1727 = vmul.f32 %v1724, %v1726
      %v1728 = vsub.f32 1.0, %v1727
      %v1729 = vmul.f32 %v1726, %v1728
      %v1730 = vadd.f32 %v1726, %v1729
      %vm1731 = vweird.f32 %v1724
      %vm1732 = vweird.f32 %v1726
      %vm1733 = vmor %vm1731, %vm1732
      %v1734 = vsel %vm1733, %v1726, %v1730
      %v1735 = vand.u32 2147483647, %v1724
      %vm1736 = vcmp.eq.f32.partialorder %v1735, 8.507059e+37
      %v1737 = vand.u32 %v1724, 2147483648
      %v1738 = vor.u32 1.1754944e-38, %v1737
      %v1739 = vsel %vm1736, %v1738, %v1734
      %v1740 = vmul.f32 1.0, %v1739
      %v1741 = vrcp.pop %v1725
      %v1742 = vmul.f32 %v1725, %v1741
      %v1743 = vsub.f32 1.0, %v1742
      %v1744 = vmul.f32 %v1741, %v1743
      %v1745 = vadd.f32 %v1741, %v1744
      %vm1746 = vweird.f32 %v1725
      %vm1747 = vweird.f32 %v1741
      %vm1748 = vmor %vm1746, %vm1747
      %v1749 = vsel %vm1748, %v1741, %v1745
      %v1750 = vand.u32 2147483647, %v1725
      %vm1751 = vcmp.eq.f32.partialorder %v1750, 8.507059e+37
      %v1752 = vand.u32 %v1725, 2147483648
      %v1753 = vor.u32 1.1754944e-38, %v1752
      %v1754 = vsel %vm1751, %v1753, %v1749
      %v1755 = vmul.f32 1.0, %v1754
      %v1756 = vmul.f32 %v1716, %v1740
      %v1757 = vmul.f32 %v1717, %v1755
      %1758 = vst [vmem:[%s278] sm:$0xff] %v1756
      %1759 = vst [vmem:[%s278 + $0x8] sm:$0xff] %v1757
      %p1760 = scmp.lt.s32.totalorder %s18, 1
      %s1761 = scalar_select %p1760, %s18, 1
      %s1762 = smul.addr %s1761, 2
      %s1763 = smul.addr %s1762, 8
      %s1764 = scalar_lea.vmem %s7, %s1763
      // Predicated region
      $region49: #{myblock_forward.1} parent=47 // pred_check
        %p1765 = pneg %p188
      $region50: #{myblock_forward.1} parent=47 // pred_check_branch
        %1767 = sbr.rel (%p1765) target = $region52
      $region51: #{myblock_forward.1} parent=47 // pred_region
        _
      $region52: #{myblock_forward.1} parent=47 // pred_fallthru
        _
    $region48: #{myblock_forward.1} parent=5 // pred_fallthru
      _
    %p1768 = scmp.le.s32.totalorder 2, %s13
    // Predicated region
    $region53: #{myblock_forward.1} parent=5 // pred_check
      %p1769 = pneg %p1768
    $region54: #{myblock_forward.1} parent=5 // pred_check_branch
      %1771 = sbr.rel (%p1769) target = $region56
    $region55: #{myblock_forward.1} parent=5 // pred_region
      %s1772 = ssub.s32 %s13, 2
      // Predicated region
      $region57: #{myblock_forward.1} parent=55 // pred_check
        %p1773 = pneg %p194
      $region58: #{myblock_forward.1} parent=55 // pred_check_branch
        %1775 = sbr.rel (%p1773) target = $region60
      $region59: #{myblock_forward.1} parent=55 // pred_region
        %p1776 = scmp.lt.s32.totalorder %s19, 1
        %s1777 = scalar_select %p1776, %s19, 1
        %s1778 = smul.addr %s1777, 2
        %s1779 = smul.addr %s1778, 8
        %s1780 = scalar_lea.vmem %s7, %s1779
      $region60: #{myblock_forward.1} parent=55 // pred_fallthru
        _
    $region56: #{myblock_forward.1} parent=5 // pred_fallthru
      _
  $region6: #{myblock_forward.1} parent=0 // loop_footer
    %s17 = sadd.s32 1, %s13
  $region7: #{myblock_forward.1} parent=0 // loop_footer_branch
    %12 = sbr.rel target = $region3
  $region8: #{myblock_forward.1} parent=0 // loop_exit
    _

</llo_original>
